<compile_context>
chip_gen: v7x
topology: tpu7x:2x2x1
jax: 0.10.0
libtpu: 0.0.40
codegen_flags: <defaults>
</compile_context>

<pallas_src>
import numpy as np
import jax
import jax.numpy as jnp
from jax.experimental import pallas as pl
from jax.experimental.pallas import tpu as pltpu

# ---- model configuration (conv_out_shape=6 => fc1 in_features = 6*6*6 = 216) ----
C_IN = 3
C_OUT = 6
K = 5                               # conv kernel size
CONV_OUT = 6                        # pooled spatial size ("conv_out_shape")
H_IN = 2 * CONV_OUT + K - 1         # 16
IN_FLAT = C_IN * H_IN * H_IN        # 768
FC_IN = C_OUT * CONV_OUT * CONV_OUT # 216
HIDDEN = 84
NUM_CLASSES = 10

PHASE_BLOCK = 256                   # 216 real feature lanes per pool-phase, padded to 256
CONV_LANES = 4 * PHASE_BLOCK        # 1024
HID_PAD = 128
OUT_PAD = 128

MAX_BATCH_TILE = 512                # rows per grid step (tuning knob); ~8 MiB VMEM working set

SELU_ALPHA = 1.6732632423543772
SELU_SCALE = 1.0507009873554805


def _selu(x):
    return SELU_SCALE * jnp.where(x > 0, x, SELU_ALPHA * (jnp.exp(x) - 1.0))


# ---------------------------------------------------------------------------
# One fused kernel: conv(as matmul) + maxpool + bias + SELU + fc1 + SELU + fc3
# grid = (N_pad / bt,); each step handles a (bt, ...) batch tile.
# ---------------------------------------------------------------------------
def fused_kernel(x_ref, wt_ref, bconv_ref, w1_ref, b1_ref, w3_ref, b3_ref, o_ref):
    # x_ref     : (bt, 768)  f32   flattened NCHW images
    # wt_ref    : (768, 1024) bf16 lowered conv weights (lanes = phase, oc, a, b)
    # bconv_ref : (1, 256)   f32   per-channel conv bias on pooled lanes (0 on pad lanes)
    # w1_ref    : (256, 128) bf16  fc1 weights (padded, transposed)
    # b1_ref    : (1, 128)   f32
    # w3_ref    : (128, 128) bf16  fc3 weights (padded, transposed)
    # b3_ref    : (1, 128)   f32
    # o_ref     : (bt, 128)  f32   logits (first 10 lanes real)
    xb = x_ref[...].astype(jnp.bfloat16)          # in-VMEM cast -> bf16 MXU path
    y = jnp.dot(xb, wt_ref[...], preferred_element_type=jnp.float32)   # (bt, 1024) f32

    # MaxPool(2,2) FIRST: the 4 pooling phases live in four 256-lane-aligned blocks.
    # (bias is phase-invariant and SELU is monotonic, so pool-before-(bias+SELU) is exact)
    pooled = jnp.maximum(
        jnp.maximum(y[:, 0 * PHASE_BLOCK:1 * PHASE_BLOCK],
                    y[:, 1 * PHASE_BLOCK:2 * PHASE_BLOCK]),
        jnp.maximum(y[:, 2 * PHASE_BLOCK:3 * PHASE_BLOCK],
                    y[:, 3 * PHASE_BLOCK:4 * PHASE_BLOCK]))
    # pooled lanes 0..215 == torch's x.view(N, -1) order (oc, h, w); 216..255 stay 0.

    h0 = _selu(pooled + bconv_ref[...])           # SELU(conv+bias) on pooled slab only
    h1 = _selu(jnp.dot(h0.astype(jnp.bfloat16), w1_ref[...],
                       preferred_element_type=jnp.float32) + b1_ref[...])
    o_ref[...] = (jnp.dot(h1.astype(jnp.bfloat16), w3_ref[...],
                          preferred_element_type=jnp.float32) + b3_ref[...])


# ---------------------------------------------------------------------------
# One-time weight preprocessing (numpy, outside the jitted hot path):
# lower the conv to a matmul, pad/transpose FC weights to 128-lane tiles, cast to bf16.
# ---------------------------------------------------------------------------
def prepare_params(params):
    wc, bc, w1, b1, w3, b3 = [np.asarray(jax.device_get(p), np.float32) for p in params]

    # Conv as matmul: Wt[ic*256 + ih*16 + iw, phase*256 + oc*36 + a*6 + b] = wc[oc,ic,kh,kw]
    # with ih = 2a + p + kh, iw = 2b + q + kw  (p,q = pooling phase, a,b = pooled coords).
    wt = np.zeros((IN_FLAT, CONV_LANES), np.float32)
    P, Q, OC, A, B, IC, KH, KW = np.indices(
        (2, 2, C_OUT, CONV_OUT, CONV_OUT, C_IN, K, K))
    lanes = (P * 2 + Q) * PHASE_BLOCK + OC * (CONV_OUT * CONV_OUT) + A * CONV_OUT + B
    rows = IC * (H_IN * H_IN) + (2 * A + P + KH) * H_IN + (2 * B + Q + KW)
    wt[rows.ravel(), lanes.ravel()] = wc[OC, IC, KH, KW].ravel()

    # Conv bias on the POOLED lane order (oc, a, b); pad lanes stay exactly 0.
    bconv = np.zeros((1, PHASE_BLOCK), np.float32)
    bconv[0, :FC_IN] = np.repeat(bc, CONV_OUT * CONV_OUT)

    w1p = np.zeros((PHASE_BLOCK, HID_PAD), np.float32)
    w1p[:FC_IN, :HIDDEN] = w1.T
    b1p = np.zeros((1, HID_PAD), np.float32)
    b1p[0, :HIDDEN] = b1
    w3p = np.zeros((HID_PAD, OUT_PAD), np.float32)
    w3p[:HIDDEN, :NUM_CLASSES] = w3.T
    b3p = np.zeros((1, OUT_PAD), np.float32)
    b3p[0, :NUM_CLASSES] = b3

    return (jnp.asarray(wt, jnp.bfloat16),
            jnp.asarray(bconv, jnp.float32),
            jnp.asarray(w1p, jnp.bfloat16),
            jnp.asarray(b1p, jnp.float32),
            jnp.asarray(w3p, jnp.bfloat16),
            jnp.asarray(b3p, jnp.float32))


# ---------------------------------------------------------------------------
# Batch-tile selection: multiple of 8, divides the 8-padded batch, <= MAX_BATCH_TILE,
# and yields >= 2 grid steps whenever possible (keeps both v7x TensorCores busy).
# ---------------------------------------------------------------------------
def _pick_batch_tile(n_pad8, batch_tile):
    if batch_tile is not None:
        bt = max(8, (int(batch_tile) // 8) * 8)
        return min(bt, max(8, n_pad8))
    cap = MAX_BATCH_TILE
    if n_pad8 >= 16:
        cap = min(cap, n_pad8 // 2)      # at least 2 grid steps
    cap = max(cap, 8)
    units = n_pad8 // 8
    best = 1
    for d in range(1, min(units, cap // 8) + 1):
        if units % d == 0:
            best = d
    return best * 8


# ---------------------------------------------------------------------------
# Forward wrapper (single pallas_call, batch-tiled parallel grid)
# ---------------------------------------------------------------------------
def selunet_forward(x, prepared, *, batch_tile=None):
    wt, bconv, w1p, b1p, w3p, b3p = prepared
    n = x.shape[0]

    n_pad8 = ((n + 7) // 8) * 8                        # sublane pad only (cheap)
    bt = _pick_batch_tile(n_pad8, batch_tile)
    n_pad = ((n_pad8 + bt - 1) // bt) * bt             # == n_pad8 when bt auto-chosen

    xf = x.reshape(n, IN_FLAT)                         # lane-dense (N, 768) view
    if n_pad != n:
        xf = jnp.pad(xf, ((0, n_pad - n), (0, 0)))

    flops = 2 * n_pad * (IN_FLAT * CONV_LANES
                         + PHASE_BLOCK * HID_PAD + HID_PAD * OUT_PAD)
    transcendentals = n_pad * (PHASE_BLOCK + HID_PAD)  # exp in the two SELUs
    bytes_accessed = (xf.size * xf.dtype.itemsize
                      + n_pad * OUT_PAD * 4
                      + sum(a.size * a.dtype.itemsize
                            for a in (wt, bconv, w1p, b1p, w3p, b3p)))

    out = pl.pallas_call(
        fused_kernel,
        out_shape=jax.ShapeDtypeStruct((n_pad, OUT_PAD), jnp.float32),
        grid=(n_pad // bt,),
        in_specs=[
            pl.BlockSpec((bt, IN_FLAT), lambda i: (i, 0)),          # images
            pl.BlockSpec((IN_FLAT, CONV_LANES), lambda i: (0, 0)),  # conv-as-matmul weights
            pl.BlockSpec((1, PHASE_BLOCK), lambda i: (0, 0)),       # conv bias (pooled lanes)
            pl.BlockSpec((PHASE_BLOCK, HID_PAD), lambda i: (0, 0)), # fc1 weights
            pl.BlockSpec((1, HID_PAD), lambda i: (0, 0)),           # fc1 bias
            pl.BlockSpec((HID_PAD, OUT_PAD), lambda i: (0, 0)),     # fc3 weights
            pl.BlockSpec((1, OUT_PAD), lambda i: (0, 0)),           # fc3 bias
        ],
        out_specs=pl.BlockSpec((bt, OUT_PAD), lambda i: (i, 0)),
        compiler_params=pltpu.CompilerParams(
            dimension_semantics=("parallel",),
            vmem_limit_bytes=32 * 1024 * 1024),
        cost_estimate=pl.CostEstimate(flops=flops,
                                      transcendentals=transcendentals,
                                      bytes_accessed=bytes_accessed),
    )(xf, wt, bconv, w1p, b1p, w3p, b3p)

    return out[:n, :NUM_CLASSES]


# ---------------------------------------------------------------------------
# Pure-JAX f32 reference (for correctness check)
# ---------------------------------------------------------------------------
def reference_forward(x, params):
    wc, bc, w1, b1, w3, b3 = params
    y = jax.lax.conv_general_dilated(
        x, wc, window_strides=(1, 1), padding='VALID',
        dimension_numbers=('NCHW', 'OIHW', 'NCHW')) + bc[None, :, None, None]
    y = _selu(y)
    y = jax.lax.reduce_window(y, -jnp.inf, jax.lax.max,
                              (1, 1, 2, 2), (1, 1, 2, 2), 'VALID')
    f = y.reshape(y.shape[0], -1)
    h = _selu(f @ w1.T + b1)
    return h @ w3.T + b3


if __name__ == "__main__":
    key = jax.random.PRNGKey(0)
    ks = jax.random.split(key, 7)

    # deterministic PyTorch-style uniform(-1/sqrt(fan_in), 1/sqrt(fan_in)) init
    kc = 1.0 / (C_IN * K * K) ** 0.5
    wc = jax.random.uniform(ks[0], (C_OUT, C_IN, K, K), jnp.float32, -kc, kc)
    bc = jax.random.uniform(ks[1], (C_OUT,), jnp.float32, -kc, kc)
    k1 = 1.0 / FC_IN ** 0.5
    w1 = jax.random.uniform(ks[2], (HIDDEN, FC_IN), jnp.float32, -k1, k1)
    b1 = jax.random.uniform(ks[3], (HIDDEN,), jnp.float32, -k1, k1)
    k3 = 1.0 / HIDDEN ** 0.5
    w3 = jax.random.uniform(ks[4], (NUM_CLASSES, HIDDEN), jnp.float32, -k3, k3)
    b3 = jax.random.uniform(ks[5], (NUM_CLASSES,), jnp.float32, -k3, k3)
    params = (wc, bc, w1, b1, w3, b3)

    prepared = prepare_params(params)          # one-time weight packing (not in hot path)
    fwd = jax.jit(selunet_forward, static_argnames=("batch_tile",))

    # small batch (2, 3, 16, 16) — padded to one 8-row tile
    x = jax.random.normal(ks[6], (2, C_IN, H_IN, H_IN), jnp.float32)
    out = jax.block_until_ready(fwd(x, prepared))
    ref = reference_forward(x, params)
    assert out.shape == (2, NUM_CLASSES), out.shape
    err = jnp.max(jnp.abs(out - ref))
    assert jnp.allclose(out, ref, atol=5e-2, rtol=5e-2), f"max abs err = {err}"  # bf16 matmuls

    # ragged batch (20) — exercises multi-step grid + 8-row sublane padding
    x2 = jax.random.normal(jax.random.PRNGKey(1), (20, C_IN, H_IN, H_IN), jnp.float32)
    out2 = jax.block_until_ready(fwd(x2, prepared))
    ref2 = reference_forward(x2, params)
    assert out2.shape == (20, NUM_CLASSES), out2.shape
    err2 = jnp.max(jnp.abs(out2 - ref2))
    assert jnp.allclose(out2, ref2, atol=5e-2, rtol=5e-2), f"max abs err = {err2}"

    print("KERNEL_OK")
</pallas_src>

<mosaic_0001>
module attributes {stable_mosaic.version = 11 : i64} {
  func.func @fused_kernel(%arg0: i32, %arg1: memref<8x768xf32, #tpu.memory_space<vmem>>, %arg2: memref<768x1024xbf16, #tpu.memory_space<vmem>>, %arg3: memref<1x256xf32, #tpu.memory_space<vmem>>, %arg4: memref<256x128xbf16, #tpu.memory_space<vmem>>, %arg5: memref<1x128xf32, #tpu.memory_space<vmem>>, %arg6: memref<128x128xbf16, #tpu.memory_space<vmem>>, %arg7: memref<1x128xf32, #tpu.memory_space<vmem>>, %arg8: memref<8x128xf32, #tpu.memory_space<vmem>>) attributes {dimension_semantics = [#tpu.dimension_semantics<parallel>], iteration_bounds = array<i64: 1>, scalar_prefetch = 0 : i64, scratch_operands = 0 : i64, tpu.core_type = #tpu.core_type<tc>, window_params = [{transform_indices = @transform_0, window_bounds = array<i64: 8, 768>}, {pipeline_mode = #tpu.pipeline_mode<synchronous>, transform_indices = @transform_1, window_bounds = array<i64: 768, 1024>}, {pipeline_mode = #tpu.pipeline_mode<synchronous>, transform_indices = @transform_2, window_bounds = array<i64: 1, 256>}, {pipeline_mode = #tpu.pipeline_mode<synchronous>, transform_indices = @transform_3, window_bounds = array<i64: 256, 128>}, {pipeline_mode = #tpu.pipeline_mode<synchronous>, transform_indices = @transform_4, window_bounds = array<i64: 1, 128>}, {pipeline_mode = #tpu.pipeline_mode<synchronous>, transform_indices = @transform_5, window_bounds = array<i64: 128, 128>}, {pipeline_mode = #tpu.pipeline_mode<synchronous>, transform_indices = @transform_6, window_bounds = array<i64: 1, 128>}, {transform_indices = @transform_7, window_bounds = array<i64: 8, 128>}]} {
    %c0 = arith.constant 0 : index
    %c0_0 = arith.constant 0 : index
    %0 = vector.load %arg1[%c0, %c0_0] : memref<8x768xf32, #tpu.memory_space<vmem>>, vector<8x768xf32>
    %1 = arith.truncf %0 : vector<8x768xf32> to vector<8x768xbf16>
    %c0_1 = arith.constant 0 : index
    %c0_2 = arith.constant 0 : index
    %2 = vector.load %arg2[%c0_1, %c0_2] : memref<768x1024xbf16, #tpu.memory_space<vmem>>, vector<768x1024xbf16>
    %cst = arith.constant dense<0.000000e+00> : vector<8x1024xf32>
    %3 = tpu.matmul %1, %2, %cst {dimension_numbers = #tpu.dot_dimension_numbers<[1], [0], [0], [1], [0, 0, 1, 1], [], []>} : vector<8x768xbf16>, vector<768x1024xbf16>, vector<8x1024xf32> -> vector<8x1024xf32>
    %4 = vector.extract_strided_slice %3 {offsets = [0, 0], sizes = [8, 256], strides = [1, 1]} : vector<8x1024xf32> to vector<8x256xf32>
    %5 = vector.extract_strided_slice %3 {offsets = [0, 256], sizes = [8, 256], strides = [1, 1]} : vector<8x1024xf32> to vector<8x256xf32>
    %6 = arith.maximumf %4, %5 : vector<8x256xf32>
    %7 = vector.extract_strided_slice %3 {offsets = [0, 512], sizes = [8, 256], strides = [1, 1]} : vector<8x1024xf32> to vector<8x256xf32>
    %8 = vector.extract_strided_slice %3 {offsets = [0, 768], sizes = [8, 256], strides = [1, 1]} : vector<8x1024xf32> to vector<8x256xf32>
    %9 = arith.maximumf %7, %8 : vector<8x256xf32>
    %10 = arith.maximumf %6, %9 : vector<8x256xf32>
    %c0_3 = arith.constant 0 : index
    %c0_4 = arith.constant 0 : index
    %11 = vector.load %arg3[%c0_3, %c0_4] : memref<1x256xf32, #tpu.memory_space<vmem>>, vector<1x256xf32>
    %12 = vector.broadcast %11 : vector<1x256xf32> to vector<8x256xf32>
    %13 = arith.addf %10, %12 : vector<8x256xf32>
    %cst_5 = arith.constant 0.000000e+00 : f32
    %14 = vector.broadcast %cst_5 : f32 to vector<8x256xf32>
    %15 = arith.cmpf ogt, %13, %14 : vector<8x256xf32>
    %16 = math.exp %13 : vector<8x256xf32>
    %cst_6 = arith.constant 1.000000e+00 : f32
    %17 = vector.broadcast %cst_6 : f32 to vector<8x256xf32>
    %18 = arith.subf %16, %17 : vector<8x256xf32>
    %cst_7 = arith.constant 1.67326319 : f32
    %19 = vector.broadcast %cst_7 : f32 to vector<8x256xf32>
    %20 = arith.mulf %19, %18 : vector<8x256xf32>
    %21 = arith.select %15, %13, %20 : vector<8x256xi1>, vector<8x256xf32>
    %cst_8 = arith.constant 1.05070102 : f32
    %22 = vector.broadcast %cst_8 : f32 to vector<8x256xf32>
    %23 = arith.mulf %22, %21 : vector<8x256xf32>
    %24 = arith.truncf %23 : vector<8x256xf32> to vector<8x256xbf16>
    %c0_9 = arith.constant 0 : index
    %c0_10 = arith.constant 0 : index
    %25 = vector.load %arg4[%c0_9, %c0_10] : memref<256x128xbf16, #tpu.memory_space<vmem>>, vector<256x128xbf16>
    %cst_11 = arith.constant dense<0.000000e+00> : vector<8x128xf32>
    %26 = tpu.matmul %24, %25, %cst_11 {dimension_numbers = #tpu.dot_dimension_numbers<[1], [0], [0], [1], [0, 0, 1, 1], [], []>} : vector<8x256xbf16>, vector<256x128xbf16>, vector<8x128xf32> -> vector<8x128xf32>
    %c0_12 = arith.constant 0 : index
    %c0_13 = arith.constant 0 : index
    %27 = vector.load %arg5[%c0_12, %c0_13] : memref<1x128xf32, #tpu.memory_space<vmem>>, vector<1x128xf32>
    %28 = vector.broadcast %27 : vector<1x128xf32> to vector<8x128xf32>
    %29 = arith.addf %26, %28 : vector<8x128xf32>
    %cst_14 = arith.constant 0.000000e+00 : f32
    %30 = vector.broadcast %cst_14 : f32 to vector<8x128xf32>
    %31 = arith.cmpf ogt, %29, %30 : vector<8x128xf32>
    %32 = math.exp %29 : vector<8x128xf32>
    %cst_15 = arith.constant 1.000000e+00 : f32
    %33 = vector.broadcast %cst_15 : f32 to vector<8x128xf32>
    %34 = arith.subf %32, %33 : vector<8x128xf32>
    %cst_16 = arith.constant 1.67326319 : f32
    %35 = vector.broadcast %cst_16 : f32 to vector<8x128xf32>
    %36 = arith.mulf %35, %34 : vector<8x128xf32>
    %37 = arith.select %31, %29, %36 : vector<8x128xi1>, vector<8x128xf32>
    %cst_17 = arith.constant 1.05070102 : f32
    %38 = vector.broadcast %cst_17 : f32 to vector<8x128xf32>
    %39 = arith.mulf %38, %37 : vector<8x128xf32>
    %40 = arith.truncf %39 : vector<8x128xf32> to vector<8x128xbf16>
    %c0_18 = arith.constant 0 : index
    %c0_19 = arith.constant 0 : index
    %41 = vector.load %arg6[%c0_18, %c0_19] : memref<128x128xbf16, #tpu.memory_space<vmem>>, vector<128x128xbf16>
    %cst_20 = arith.constant dense<0.000000e+00> : vector<8x128xf32>
    %42 = tpu.matmul %40, %41, %cst_20 {dimension_numbers = #tpu.dot_dimension_numbers<[1], [0], [0], [1], [0, 0, 1, 1], [], []>} : vector<8x128xbf16>, vector<128x128xbf16>, vector<8x128xf32> -> vector<8x128xf32>
    %c0_21 = arith.constant 0 : index
    %c0_22 = arith.constant 0 : index
    %43 = vector.load %arg7[%c0_21, %c0_22] : memref<1x128xf32, #tpu.memory_space<vmem>>, vector<1x128xf32>
    %44 = vector.broadcast %43 : vector<1x128xf32> to vector<8x128xf32>
    %45 = arith.addf %42, %44 : vector<8x128xf32>
    %c0_23 = arith.constant 0 : index
    %c0_24 = arith.constant 0 : index
    %46 = vector.load %arg8[%c0_23, %c0_24] : memref<8x128xf32, #tpu.memory_space<vmem>>, vector<8x128xf32>
    tpu.vector_store %arg8[%c0_23, %c0_24], %45 {strides = array<i32>} : memref<8x128xf32, #tpu.memory_space<vmem>>, vector<8x128xf32>,
    return
  }
  func.func @transform_0(%arg0: i32) -> (i32, i32) {
    %c0_i32 = arith.constant 0 : i32
    %c0_i32_0 = arith.constant 0 : i32
    return %arg0, %c0_i32 : i32, i32
  }
  func.func @transform_1(%arg0: i32) -> (i32, i32) {
    %c0_i32 = arith.constant 0 : i32
    %c0_i32_0 = arith.constant 0 : i32
    %c0_i32_1 = arith.constant 0 : i32
    return %c0_i32, %c0_i32_0 : i32, i32
  }
  func.func @transform_2(%arg0: i32) -> (i32, i32) {
    %c0_i32 = arith.constant 0 : i32
    %c0_i32_0 = arith.constant 0 : i32
    %c0_i32_1 = arith.constant 0 : i32
    return %c0_i32, %c0_i32_0 : i32, i32
  }
  func.func @transform_3(%arg0: i32) -> (i32, i32) {
    %c0_i32 = arith.constant 0 : i32
    %c0_i32_0 = arith.constant 0 : i32
    %c0_i32_1 = arith.constant 0 : i32
    return %c0_i32, %c0_i32_0 : i32, i32
  }
  func.func @transform_4(%arg0: i32) -> (i32, i32) {
    %c0_i32 = arith.constant 0 : i32
    %c0_i32_0 = arith.constant 0 : i32
    %c0_i32_1 = arith.constant 0 : i32
    return %c0_i32, %c0_i32_0 : i32, i32
  }
  func.func @transform_5(%arg0: i32) -> (i32, i32) {
    %c0_i32 = arith.constant 0 : i32
    %c0_i32_0 = arith.constant 0 : i32
    %c0_i32_1 = arith.constant 0 : i32
    return %c0_i32, %c0_i32_0 : i32, i32
  }
  func.func @transform_6(%arg0: i32) -> (i32, i32) {
    %c0_i32 = arith.constant 0 : i32
    %c0_i32_0 = arith.constant 0 : i32
    %c0_i32_1 = arith.constant 0 : i32
    return %c0_i32, %c0_i32_0 : i32, i32
  }
  func.func @transform_7(%arg0: i32) -> (i32, i32) {
    %c0_i32 = arith.constant 0 : i32
    %c0_i32_0 = arith.constant 0 : i32
    return %arg0, %c0_i32 : i32, i32
  }
}

</mosaic_0001>

<llo_original>
// kernel: selunet_forward.1
$region0: #{selunet_forward.1}
  #allocation0 [shape = 'u32[]', space=smem, size = 0x4, offset = 0x4, fixed_abs, tag = 'smem constant byte address 0x4 - core index']
  #allocation1 [shape = 'u32[144,128]{1,0:T(1,128)}', space=vmem, size = 0x12000, scoped, tag = 'internal scratch']
  %s0 = inlined_call_operand.vmem [shape: f32[8,768], index: 0, kind: input, shape index: {}]
  %s1 = inlined_call_operand.hbm [shape: bf16[768,1024], index: 1, kind: input, shape index: {}]
  %s2 = inlined_call_operand.hbm [shape: f32[1,256], index: 2, kind: input, shape index: {}]
  %s3 = inlined_call_operand.hbm [shape: bf16[256,128], index: 3, kind: input, shape index: {}]
  %s4 = inlined_call_operand.hbm [shape: f32[1,128], index: 4, kind: input, shape index: {}]
  %s5 = inlined_call_operand.hbm [shape: bf16[128,128], index: 5, kind: input, shape index: {}]
  %s6 = inlined_call_operand.hbm [shape: f32[1,128], index: 6, kind: input, shape index: {}]
  %s7 = inlined_call_operand.vmem [shape: f32[8,128], index: 7, kind: output, shape index: {}]
  %s8 = sld [smem:[#allocation0]]
  $region62: #{selunet_forward.1} parent=0
    _
  %s10 = ssub.s32 1, %s8
  %s11 = scalar_select 0, %s10, %s8
  $region1: #{selunet_forward.1} parent=0
    #allocation2 [shape = 'u8[1572864]{0}', space=vmem, size = 0x180000, scoped, tag = 'input window, operand 1, single buffered']
    #allocation3 [shape = 's32[1]{0}', space=sflag, size = 0x4, scoped, tag = 'scoped memory for selunet_forward.1']
    #allocation4 [shape = 'u8[1024]{0}', space=vmem, size = 0x400, scoped, tag = 'input window, operand 2, single buffered']
    #allocation5 [shape = 's32[1]{0}', space=sflag, size = 0x4, scoped, tag = 'scoped memory for selunet_forward.1']
    #allocation6 [shape = 'u8[65536]{0}', space=vmem, size = 0x10000, scoped, tag = 'input window, operand 3, single buffered']
    #allocation7 [shape = 'u8[512]{0}', space=vmem, size = 0x400, scoped, tag = 'input window, operand 4, single buffered']
    #allocation8 [shape = 's32[1]{0}', space=sflag, size = 0x4, scoped, tag = 'scoped memory for selunet_forward.1']
    #allocation9 [shape = 'u8[32768]{0}', space=vmem, size = 0x8000, scoped, tag = 'input window, operand 5, single buffered']
    #allocation10 [shape = 'u8[512]{0}', space=vmem, size = 0x400, scoped, tag = 'input window, operand 6, single buffered']
    #allocation11 [shape = 's32[1]{0}', space=sflag, size = 0x4, scoped, tag = 'scoped memory for selunet_forward.1']
    %12 = vsyncpa [#allocation3], 0
    %13 = vsyncpa [#allocation5], 0
    %14 = vsyncpa [#allocation8], 0
    %15 = vsyncpa [#allocation11], 0
    // Predicated region
    $region2: #{selunet_forward.1} parent=1 // pred_check
      _
    $region3: #{selunet_forward.1} parent=1 // pred_check_branch
      %17 = sbr.rel (0) target = $region5
    $region4: #{selunet_forward.1} parent=1 // pred_region
      _
    $region5: #{selunet_forward.1} parent=1 // pred_fallthru
      _
    // Predicated region
    $region6: #{selunet_forward.1} parent=1 // pred_check
      _
    $region7: #{selunet_forward.1} parent=1 // pred_check_branch
      %19 = sbr.rel (0) target = $region9
    $region8: #{selunet_forward.1} parent=1 // pred_region
      %s21 = ssub.s32 49152, 49152
      %22 = vsyncadd [#allocation3], %s21
      %s23 = sshll.u32 [#allocation2], 4
      %s24 = int_to_ptr.vmem [resolvable:$true] %s23
      %29 = dma.hbm_to_vmem [thread:$0]  %s1, 49152, %s24, [#allocation3], 512, 512, 32
    $region9: #{selunet_forward.1} parent=1 // pred_fallthru
      _
    // Predicated region
    $region10: #{selunet_forward.1} parent=1 // pred_check
      _
    $region11: #{selunet_forward.1} parent=1 // pred_check_branch
      %31 = sbr.rel (0) target = $region13
    $region12: #{selunet_forward.1} parent=1 // pred_region
      %s33 = ssub.s32 32, 32
      %34 = vsyncadd [#allocation5], %s33
      %s36 = sshll.u32 [#allocation4], 4
      %s37 = int_to_ptr.vmem [resolvable:$true] %s36
      %39 = dma.hbm_to_vmem [thread:$0]  %s2, 32, %s37, [#allocation5]
    $region13: #{selunet_forward.1} parent=1 // pred_fallthru
      _
    // Predicated region
    $region14: #{selunet_forward.1} parent=1 // pred_check
      _
    $region15: #{selunet_forward.1} parent=1 // pred_check_branch
      %41 = sbr.rel (0) target = $region17
    $region16: #{selunet_forward.1} parent=1 // pred_region
      %s43 = ssub.s32 2048, 2048
      %44 = vsyncadd [#allocation5], %s43
      %s45 = sshll.u32 [#allocation6], 4
      %s46 = int_to_ptr.vmem [resolvable:$true] %s45
      %51 = dma.hbm_to_vmem [thread:$0]  %s3, 2048, %s46, [#allocation5], 64, 64, 4
    $region17: #{selunet_forward.1} parent=1 // pred_fallthru
      _
    // Predicated region
    $region18: #{selunet_forward.1} parent=1 // pred_check
      _
    $region19: #{selunet_forward.1} parent=1 // pred_check_branch
      %53 = sbr.rel (0) target = $region21
    $region20: #{selunet_forward.1} parent=1 // pred_region
      %s55 = ssub.s32 16, 16
      %56 = vsyncadd [#allocation8], %s55
      %s58 = sshll.u32 [#allocation7], 4
      %s59 = int_to_ptr.vmem [resolvable:$true] %s58
      %61 = dma.hbm_to_vmem [thread:$0]  %s4, 16, %s59, [#allocation8]
    $region21: #{selunet_forward.1} parent=1 // pred_fallthru
      _
    // Predicated region
    $region22: #{selunet_forward.1} parent=1 // pred_check
      _
    $region23: #{selunet_forward.1} parent=1 // pred_check_branch
      %63 = sbr.rel (0) target = $region25
    $region24: #{selunet_forward.1} parent=1 // pred_region
      %s65 = ssub.s32 1024, 1024
      %66 = vsyncadd [#allocation8], %s65
      %s67 = sshll.u32 [#allocation9], 4
      %s68 = int_to_ptr.vmem [resolvable:$true] %s67
      %73 = dma.hbm_to_vmem [thread:$0]  %s5, 1024, %s68, [#allocation8], 64, 64, 4
    $region25: #{selunet_forward.1} parent=1 // pred_fallthru
      _
    // Predicated region
    $region26: #{selunet_forward.1} parent=1 // pred_check
      _
    $region27: #{selunet_forward.1} parent=1 // pred_check_branch
      %75 = sbr.rel (0) target = $region29
    $region28: #{selunet_forward.1} parent=1 // pred_region
      %s77 = ssub.s32 16, 16
      %78 = vsyncadd [#allocation11], %s77
      %s80 = sshll.u32 [#allocation10], 4
      %s81 = int_to_ptr.vmem [resolvable:$true] %s80
      %83 = dma.hbm_to_vmem [thread:$0]  %s6, 16, %s81, [#allocation11]
    $region29: #{selunet_forward.1} parent=1 // pred_fallthru
      _
    // Predicated region
    $region30: #{selunet_forward.1} parent=1 // pred_check
      _
    $region31: #{selunet_forward.1} parent=1 // pred_check_branch
      %85 = sbr.rel (0) target = $region33
    $region32: #{selunet_forward.1} parent=1 // pred_region
      %86 = dma.done [#allocation3], 49152
    $region33: #{selunet_forward.1} parent=1 // pred_fallthru
      _
    // Predicated region
    $region34: #{selunet_forward.1} parent=1 // pred_check
      _
    $region35: #{selunet_forward.1} parent=1 // pred_check_branch
      %88 = sbr.rel (0) target = $region37
    $region36: #{selunet_forward.1} parent=1 // pred_region
      %89 = dma.done [#allocation5], 32
    $region37: #{selunet_forward.1} parent=1 // pred_fallthru
      _
    // Predicated region
    $region38: #{selunet_forward.1} parent=1 // pred_check
      _
    $region39: #{selunet_forward.1} parent=1 // pred_check_branch
      %91 = sbr.rel (0) target = $region41
    $region40: #{selunet_forward.1} parent=1 // pred_region
      %92 = dma.done [#allocation5], 2048
    $region41: #{selunet_forward.1} parent=1 // pred_fallthru
      _
    // Predicated region
    $region42: #{selunet_forward.1} parent=1 // pred_check
      _
    $region43: #{selunet_forward.1} parent=1 // pred_check_branch
      %94 = sbr.rel (0) target = $region45
    $region44: #{selunet_forward.1} parent=1 // pred_region
      %95 = dma.done [#allocation8], 16
    $region45: #{selunet_forward.1} parent=1 // pred_fallthru
      _
    // Predicated region
    $region46: #{selunet_forward.1} parent=1 // pred_check
      _
    $region47: #{selunet_forward.1} parent=1 // pred_check_branch
      %97 = sbr.rel (0) target = $region49
    $region48: #{selunet_forward.1} parent=1 // pred_region
      %98 = dma.done [#allocation8], 1024
    $region49: #{selunet_forward.1} parent=1 // pred_fallthru
      _
    // Predicated region
    $region50: #{selunet_forward.1} parent=1 // pred_check
      _
    $region51: #{selunet_forward.1} parent=1 // pred_check_branch
      %100 = sbr.rel (0) target = $region53
    $region52: #{selunet_forward.1} parent=1 // pred_region
      %101 = dma.done [#allocation11], 16
    $region53: #{selunet_forward.1} parent=1 // pred_fallthru
      _
    %v103 = vld [vmem:[%s0] sm:$0xff]
    %v104 = vld [vmem:[%s0 + $0x8] sm:$0xff]
    %v105 = vld [vmem:[%s0 + $0x10] sm:$0xff]
    %v106 = vld [vmem:[%s0 + $0x18] sm:$0xff]
    %v107 = vld [vmem:[%s0 + $0x20] sm:$0xff]
    %v108 = vld [vmem:[%s0 + $0x28] sm:$0xff]
    %v109 = vpack.c.bf16 %v103, %v103
    %v110 = vpack.c.bf16 %v104, %v104
    %v111 = vpack.c.bf16 %v105, %v105
    %v112 = vpack.c.bf16 %v106, %v106
    %v113 = vpack.c.bf16 %v107, %v107
    %v114 = vpack.c.bf16 %v108, %v108
    %v115 = vld [vmem:[#allocation2] sm:$0xff]
    %v116 = vld [vmem:[#allocation2 + $0x8] sm:$0xff]
    %v117 = vld [vmem:[#allocation2 + $0x10] sm:$0xff]
    %v118 = vld [vmem:[#allocation2 + $0x18] sm:$0xff]
    %v119 = vld [vmem:[#allocation2 + $0x20] sm:$0xff]
    %v120 = vld [vmem:[#allocation2 + $0x28] sm:$0xff]
    %v121 = vld [vmem:[#allocation2 + $0x30] sm:$0xff]
    %v122 = vld [vmem:[#allocation2 + $0x38] sm:$0xff]
    %v123 = vld [vmem:[#allocation2 + $0x40] sm:$0xff]
    %v124 = vld [vmem:[#allocation2 + $0x48] sm:$0xff]
    %v125 = vld [vmem:[#allocation2 + $0x50] sm:$0xff]
    %v126 = vld [vmem:[#allocation2 + $0x58] sm:$0xff]
    %v127 = vld [vmem:[#allocation2 + $0x60] sm:$0xff]
    %v128 = vld [vmem:[#allocation2 + $0x68] sm:$0xff]
    %v129 = vld [vmem:[#allocation2 + $0x70] sm:$0xff]
    %v130 = vld [vmem:[#allocation2 + $0x78] sm:$0xff]
    %v131 = vld [vmem:[#allocation2 + $0x80] sm:$0xff]
    %v132 = vld [vmem:[#allocation2 + $0x88] sm:$0xff]
    %v133 = vld [vmem:[#allocation2 + $0x90] sm:$0xff]
    %v134 = vld [vmem:[#allocation2 + $0x98] sm:$0xff]
    %v135 = vld [vmem:[#allocation2 + $0xa0] sm:$0xff]
    %v136 = vld [vmem:[#allocation2 + $0xa8] sm:$0xff]
    %v137 = vld [vmem:[#allocation2 + $0xb0] sm:$0xff]
    %v138 = vld [vmem:[#allocation2 + $0xb8] sm:$0xff]
    %v139 = vld [vmem:[#allocation2 + $0xc0] sm:$0xff]
    %v140 = vld [vmem:[#allocation2 + $0xc8] sm:$0xff]
    %v141 = vld [vmem:[#allocation2 + $0xd0] sm:$0xff]
    %v142 = vld [vmem:[#allocation2 + $0xd8] sm:$0xff]
    %v143 = vld [vmem:[#allocation2 + $0xe0] sm:$0xff]
    %v144 = vld [vmem:[#allocation2 + $0xe8] sm:$0xff]
    %v145 = vld [vmem:[#allocation2 + $0xf0] sm:$0xff]
    %v146 = vld [vmem:[#allocation2 + $0xf8] sm:$0xff]
    %v147 = vld [vmem:[#allocation2 + $0x100] sm:$0xff]
    %v148 = vld [vmem:[#allocation2 + $0x108] sm:$0xff]
    %v149 = vld [vmem:[#allocation2 + $0x110] sm:$0xff]
    %v150 = vld [vmem:[#allocation2 + $0x118] sm:$0xff]
    %v151 = vld [vmem:[#allocation2 + $0x120] sm:$0xff]
    %v152 = vld [vmem:[#allocation2 + $0x128] sm:$0xff]
    %v153 = vld [vmem:[#allocation2 + $0x130] sm:$0xff]
    %v154 = vld [vmem:[#allocation2 + $0x138] sm:$0xff]
    %v155 = vld [vmem:[#allocation2 + $0x140] sm:$0xff]
    %v156 = vld [vmem:[#allocation2 + $0x148] sm:$0xff]
    %v157 = vld [vmem:[#allocation2 + $0x150] sm:$0xff]
    %v158 = vld [vmem:[#allocation2 + $0x158] sm:$0xff]
    %v159 = vld [vmem:[#allocation2 + $0x160] sm:$0xff]
    %v160 = vld [vmem:[#allocation2 + $0x168] sm:$0xff]
    %v161 = vld [vmem:[#allocation2 + $0x170] sm:$0xff]
    %v162 = vld [vmem:[#allocation2 + $0x178] sm:$0xff]
    %v163 = vld [vmem:[#allocation2 + $0x180] sm:$0xff]
    %v164 = vld [vmem:[#allocation2 + $0x188] sm:$0xff]
    %v165 = vld [vmem:[#allocation2 + $0x190] sm:$0xff]
    %v166 = vld [vmem:[#allocation2 + $0x198] sm:$0xff]
    %v167 = vld [vmem:[#allocation2 + $0x1a0] sm:$0xff]
    %v168 = vld [vmem:[#allocation2 + $0x1a8] sm:$0xff]
    %v169 = vld [vmem:[#allocation2 + $0x1b0] sm:$0xff]
    %v170 = vld [vmem:[#allocation2 + $0x1b8] sm:$0xff]
    %v171 = vld [vmem:[#allocation2 + $0x1c0] sm:$0xff]
    %v172 = vld [vmem:[#allocation2 + $0x1c8] sm:$0xff]
    %v173 = vld [vmem:[#allocation2 + $0x1d0] sm:$0xff]
    %v174 = vld [vmem:[#allocation2 + $0x1d8] sm:$0xff]
    %v175 = vld [vmem:[#allocation2 + $0x1e0] sm:$0xff]
    %v176 = vld [vmem:[#allocation2 + $0x1e8] sm:$0xff]
    %v177 = vld [vmem:[#allocation2 + $0x1f0] sm:$0xff]
    %v178 = vld [vmem:[#allocation2 + $0x1f8] sm:$0xff]
    %v179 = vld [vmem:[#allocation2 + $0x200] sm:$0xff]
    %v180 = vld [vmem:[#allocation2 + $0x208] sm:$0xff]
    %v181 = vld [vmem:[#allocation2 + $0x210] sm:$0xff]
    %v182 = vld [vmem:[#allocation2 + $0x218] sm:$0xff]
    %v183 = vld [vmem:[#allocation2 + $0x220] sm:$0xff]
    %v184 = vld [vmem:[#allocation2 + $0x228] sm:$0xff]
    %v185 = vld [vmem:[#allocation2 + $0x230] sm:$0xff]
    %v186 = vld [vmem:[#allocation2 + $0x238] sm:$0xff]
    %v187 = vld [vmem:[#allocation2 + $0x240] sm:$0xff]
    %v188 = vld [vmem:[#allocation2 + $0x248] sm:$0xff]
    %v189 = vld [vmem:[#allocation2 + $0x250] sm:$0xff]
    %v190 = vld [vmem:[#allocation2 + $0x258] sm:$0xff]
    %v191 = vld [vmem:[#allocation2 + $0x260] sm:$0xff]
    %v192 = vld [vmem:[#allocation2 + $0x268] sm:$0xff]
    %v193 = vld [vmem:[#allocation2 + $0x270] sm:$0xff]
    %v194 = vld [vmem:[#allocation2 + $0x278] sm:$0xff]
    %v195 = vld [vmem:[#allocation2 + $0x280] sm:$0xff]
    %v196 = vld [vmem:[#allocation2 + $0x288] sm:$0xff]
    %v197 = vld [vmem:[#allocation2 + $0x290] sm:$0xff]
    %v198 = vld [vmem:[#allocation2 + $0x298] sm:$0xff]
    %v199 = vld [vmem:[#allocation2 + $0x2a0] sm:$0xff]
    %v200 = vld [vmem:[#allocation2 + $0x2a8] sm:$0xff]
    %v201 = vld [vmem:[#allocation2 + $0x2b0] sm:$0xff]
    %v202 = vld [vmem:[#allocation2 + $0x2b8] sm:$0xff]
    %v203 = vld [vmem:[#allocation2 + $0x2c0] sm:$0xff]
    %v204 = vld [vmem:[#allocation2 + $0x2c8] sm:$0xff]
    %v205 = vld [vmem:[#allocation2 + $0x2d0] sm:$0xff]
    %v206 = vld [vmem:[#allocation2 + $0x2d8] sm:$0xff]
    %v207 = vld [vmem:[#allocation2 + $0x2e0] sm:$0xff]
    %v208 = vld [vmem:[#allocation2 + $0x2e8] sm:$0xff]
    %v209 = vld [vmem:[#allocation2 + $0x2f0] sm:$0xff]
    %v210 = vld [vmem:[#allocation2 + $0x2f8] sm:$0xff]
    %v211 = vld [vmem:[#allocation2 + $0x300] sm:$0xff]
    %v212 = vld [vmem:[#allocation2 + $0x308] sm:$0xff]
    %v213 = vld [vmem:[#allocation2 + $0x310] sm:$0xff]
    %v214 = vld [vmem:[#allocation2 + $0x318] sm:$0xff]
    %v215 = vld [vmem:[#allocation2 + $0x320] sm:$0xff]
    %v216 = vld [vmem:[#allocation2 + $0x328] sm:$0xff]
    %v217 = vld [vmem:[#allocation2 + $0x330] sm:$0xff]
    %v218 = vld [vmem:[#allocation2 + $0x338] sm:$0xff]
    %v219 = vld [vmem:[#allocation2 + $0x340] sm:$0xff]
    %v220 = vld [vmem:[#allocation2 + $0x348] sm:$0xff]
    %v221 = vld [vmem:[#allocation2 + $0x350] sm:$0xff]
    %v222 = vld [vmem:[#allocation2 + $0x358] sm:$0xff]
    %v223 = vld [vmem:[#allocation2 + $0x360] sm:$0xff]
    %v224 = vld [vmem:[#allocation2 + $0x368] sm:$0xff]
    %v225 = vld [vmem:[#allocation2 + $0x370] sm:$0xff]
    %v226 = vld [vmem:[#allocation2 + $0x378] sm:$0xff]
    %v227 = vld [vmem:[#allocation2 + $0x380] sm:$0xff]
    %v228 = vld [vmem:[#allocation2 + $0x388] sm:$0xff]
    %v229 = vld [vmem:[#allocation2 + $0x390] sm:$0xff]
    %v230 = vld [vmem:[#allocation2 + $0x398] sm:$0xff]
    %v231 = vld [vmem:[#allocation2 + $0x3a0] sm:$0xff]
    %v232 = vld [vmem:[#allocation2 + $0x3a8] sm:$0xff]
    %v233 = vld [vmem:[#allocation2 + $0x3b0] sm:$0xff]
    %v234 = vld [vmem:[#allocation2 + $0x3b8] sm:$0xff]
    %v235 = vld [vmem:[#allocation2 + $0x3c0] sm:$0xff]
    %v236 = vld [vmem:[#allocation2 + $0x3c8] sm:$0xff]
    %v237 = vld [vmem:[#allocation2 + $0x3d0] sm:$0xff]
    %v238 = vld [vmem:[#allocation2 + $0x3d8] sm:$0xff]
    %v239 = vld [vmem:[#allocation2 + $0x3e0] sm:$0xff]
    %v240 = vld [vmem:[#allocation2 + $0x3e8] sm:$0xff]
    %v241 = vld [vmem:[#allocation2 + $0x3f0] sm:$0xff]
    %v242 = vld [vmem:[#allocation2 + $0x3f8] sm:$0xff]
    %v243 = vld [vmem:[#allocation2 + $0x400] sm:$0xff]
    %v244 = vld [vmem:[#allocation2 + $0x408] sm:$0xff]
    %v245 = vld [vmem:[#allocation2 + $0x410] sm:$0xff]
    %v246 = vld [vmem:[#allocation2 + $0x418] sm:$0xff]
    %v247 = vld [vmem:[#allocation2 + $0x420] sm:$0xff]
    %v248 = vld [vmem:[#allocation2 + $0x428] sm:$0xff]
    %v249 = vld [vmem:[#allocation2 + $0x430] sm:$0xff]
    %v250 = vld [vmem:[#allocation2 + $0x438] sm:$0xff]
    %v251 = vld [vmem:[#allocation2 + $0x440] sm:$0xff]
    %v252 = vld [vmem:[#allocation2 + $0x448] sm:$0xff]
    %v253 = vld [vmem:[#allocation2 + $0x450] sm:$0xff]
    %v254 = vld [vmem:[#allocation2 + $0x458] sm:$0xff]
    %v255 = vld [vmem:[#allocation2 + $0x460] sm:$0xff]
    %v256 = vld [vmem:[#allocation2 + $0x468] sm:$0xff]
    %v257 = vld [vmem:[#allocation2 + $0x470] sm:$0xff]
    %v258 = vld [vmem:[#allocation2 + $0x478] sm:$0xff]
    %v259 = vld [vmem:[#allocation2 + $0x480] sm:$0xff]
    %v260 = vld [vmem:[#allocation2 + $0x488] sm:$0xff]
    %v261 = vld [vmem:[#allocation2 + $0x490] sm:$0xff]
    %v262 = vld [vmem:[#allocation2 + $0x498] sm:$0xff]
    %v263 = vld [vmem:[#allocation2 + $0x4a0] sm:$0xff]
    %v264 = vld [vmem:[#allocation2 + $0x4a8] sm:$0xff]
    %v265 = vld [vmem:[#allocation2 + $0x4b0] sm:$0xff]
    %v266 = vld [vmem:[#allocation2 + $0x4b8] sm:$0xff]
    %v267 = vld [vmem:[#allocation2 + $0x4c0] sm:$0xff]
    %v268 = vld [vmem:[#allocation2 + $0x4c8] sm:$0xff]
    %v269 = vld [vmem:[#allocation2 + $0x4d0] sm:$0xff]
    %v270 = vld [vmem:[#allocation2 + $0x4d8] sm:$0xff]
    %v271 = vld [vmem:[#allocation2 + $0x4e0] sm:$0xff]
    %v272 = vld [vmem:[#allocation2 + $0x4e8] sm:$0xff]
    %v273 = vld [vmem:[#allocation2 + $0x4f0] sm:$0xff]
    %v274 = vld [vmem:[#allocation2 + $0x4f8] sm:$0xff]
    %v275 = vld [vmem:[#allocation2 + $0x500] sm:$0xff]
    %v276 = vld [vmem:[#allocation2 + $0x508] sm:$0xff]
    %v277 = vld [vmem:[#allocation2 + $0x510] sm:$0xff]
    %v278 = vld [vmem:[#allocation2 + $0x518] sm:$0xff]
    %v279 = vld [vmem:[#allocation2 + $0x520] sm:$0xff]
    %v280 = vld [vmem:[#allocation2 + $0x528] sm:$0xff]
    %v281 = vld [vmem:[#allocation2 + $0x530] sm:$0xff]
    %v282 = vld [vmem:[#allocation2 + $0x538] sm:$0xff]
    %v283 = vld [vmem:[#allocation2 + $0x540] sm:$0xff]
    %v284 = vld [vmem:[#allocation2 + $0x548] sm:$0xff]
    %v285 = vld [vmem:[#allocation2 + $0x550] sm:$0xff]
    %v286 = vld [vmem:[#allocation2 + $0x558] sm:$0xff]
    %v287 = vld [vmem:[#allocation2 + $0x560] sm:$0xff]
    %v288 = vld [vmem:[#allocation2 + $0x568] sm:$0xff]
    %v289 = vld [vmem:[#allocation2 + $0x570] sm:$0xff]
    %v290 = vld [vmem:[#allocation2 + $0x578] sm:$0xff]
    %v291 = vld [vmem:[#allocation2 + $0x580] sm:$0xff]
    %v292 = vld [vmem:[#allocation2 + $0x588] sm:$0xff]
    %v293 = vld [vmem:[#allocation2 + $0x590] sm:$0xff]
    %v294 = vld [vmem:[#allocation2 + $0x598] sm:$0xff]
    %v295 = vld [vmem:[#allocation2 + $0x5a0] sm:$0xff]
    %v296 = vld [vmem:[#allocation2 + $0x5a8] sm:$0xff]
    %v297 = vld [vmem:[#allocation2 + $0x5b0] sm:$0xff]
    %v298 = vld [vmem:[#allocation2 + $0x5b8] sm:$0xff]
    %v299 = vld [vmem:[#allocation2 + $0x5c0] sm:$0xff]
    %v300 = vld [vmem:[#allocation2 + $0x5c8] sm:$0xff]
    %v301 = vld [vmem:[#allocation2 + $0x5d0] sm:$0xff]
    %v302 = vld [vmem:[#allocation2 + $0x5d8] sm:$0xff]
    %v303 = vld [vmem:[#allocation2 + $0x5e0] sm:$0xff]
    %v304 = vld [vmem:[#allocation2 + $0x5e8] sm:$0xff]
    %v305 = vld [vmem:[#allocation2 + $0x5f0] sm:$0xff]
    %v306 = vld [vmem:[#allocation2 + $0x5f8] sm:$0xff]
    %v307 = vld [vmem:[#allocation2 + $0x600] sm:$0xff]
    %v308 = vld [vmem:[#allocation2 + $0x608] sm:$0xff]
    %v309 = vld [vmem:[#allocation2 + $0x610] sm:$0xff]
    %v310 = vld [vmem:[#allocation2 + $0x618] sm:$0xff]
    %v311 = vld [vmem:[#allocation2 + $0x620] sm:$0xff]
    %v312 = vld [vmem:[#allocation2 + $0x628] sm:$0xff]
    %v313 = vld [vmem:[#allocation2 + $0x630] sm:$0xff]
    %v314 = vld [vmem:[#allocation2 + $0x638] sm:$0xff]
    %v315 = vld [vmem:[#allocation2 + $0x640] sm:$0xff]
    %v316 = vld [vmem:[#allocation2 + $0x648] sm:$0xff]
    %v317 = vld [vmem:[#allocation2 + $0x650] sm:$0xff]
    %v318 = vld [vmem:[#allocation2 + $0x658] sm:$0xff]
    %v319 = vld [vmem:[#allocation2 + $0x660] sm:$0xff]
    %v320 = vld [vmem:[#allocation2 + $0x668] sm:$0xff]
    %v321 = vld [vmem:[#allocation2 + $0x670] sm:$0xff]
    %v322 = vld [vmem:[#allocation2 + $0x678] sm:$0xff]
    %v323 = vld [vmem:[#allocation2 + $0x680] sm:$0xff]
    %v324 = vld [vmem:[#allocation2 + $0x688] sm:$0xff]
    %v325 = vld [vmem:[#allocation2 + $0x690] sm:$0xff]
    %v326 = vld [vmem:[#allocation2 + $0x698] sm:$0xff]
    %v327 = vld [vmem:[#allocation2 + $0x6a0] sm:$0xff]
    %v328 = vld [vmem:[#allocation2 + $0x6a8] sm:$0xff]
    %v329 = vld [vmem:[#allocation2 + $0x6b0] sm:$0xff]
    %v330 = vld [vmem:[#allocation2 + $0x6b8] sm:$0xff]
    %v331 = vld [vmem:[#allocation2 + $0x6c0] sm:$0xff]
    %v332 = vld [vmem:[#allocation2 + $0x6c8] sm:$0xff]
    %v333 = vld [vmem:[#allocation2 + $0x6d0] sm:$0xff]
    %v334 = vld [vmem:[#allocation2 + $0x6d8] sm:$0xff]
    %v335 = vld [vmem:[#allocation2 + $0x6e0] sm:$0xff]
    %v336 = vld [vmem:[#allocation2 + $0x6e8] sm:$0xff]
    %v337 = vld [vmem:[#allocation2 + $0x6f0] sm:$0xff]
    %v338 = vld [vmem:[#allocation2 + $0x6f8] sm:$0xff]
    %v339 = vld [vmem:[#allocation2 + $0x700] sm:$0xff]
    %v340 = vld [vmem:[#allocation2 + $0x708] sm:$0xff]
    %v341 = vld [vmem:[#allocation2 + $0x710] sm:$0xff]
    %v342 = vld [vmem:[#allocation2 + $0x718] sm:$0xff]
    %v343 = vld [vmem:[#allocation2 + $0x720] sm:$0xff]
    %v344 = vld [vmem:[#allocation2 + $0x728] sm:$0xff]
    %v345 = vld [vmem:[#allocation2 + $0x730] sm:$0xff]
    %v346 = vld [vmem:[#allocation2 + $0x738] sm:$0xff]
    %v347 = vld [vmem:[#allocation2 + $0x740] sm:$0xff]
    %v348 = vld [vmem:[#allocation2 + $0x748] sm:$0xff]
    %v349 = vld [vmem:[#allocation2 + $0x750] sm:$0xff]
    %v350 = vld [vmem:[#allocation2 + $0x758] sm:$0xff]
    %v351 = vld [vmem:[#allocation2 + $0x760] sm:$0xff]
    %v352 = vld [vmem:[#allocation2 + $0x768] sm:$0xff]
    %v353 = vld [vmem:[#allocation2 + $0x770] sm:$0xff]
    %v354 = vld [vmem:[#allocation2 + $0x778] sm:$0xff]
    %v355 = vld [vmem:[#allocation2 + $0x780] sm:$0xff]
    %v356 = vld [vmem:[#allocation2 + $0x788] sm:$0xff]
    %v357 = vld [vmem:[#allocation2 + $0x790] sm:$0xff]
    %v358 = vld [vmem:[#allocation2 + $0x798] sm:$0xff]
    %v359 = vld [vmem:[#allocation2 + $0x7a0] sm:$0xff]
    %v360 = vld [vmem:[#allocation2 + $0x7a8] sm:$0xff]
    %v361 = vld [vmem:[#allocation2 + $0x7b0] sm:$0xff]
    %v362 = vld [vmem:[#allocation2 + $0x7b8] sm:$0xff]
    %v363 = vld [vmem:[#allocation2 + $0x7c0] sm:$0xff]
    %v364 = vld [vmem:[#allocation2 + $0x7c8] sm:$0xff]
    %v365 = vld [vmem:[#allocation2 + $0x7d0] sm:$0xff]
    %v366 = vld [vmem:[#allocation2 + $0x7d8] sm:$0xff]
    %v367 = vld [vmem:[#allocation2 + $0x7e0] sm:$0xff]
    %v368 = vld [vmem:[#allocation2 + $0x7e8] sm:$0xff]
    %v369 = vld [vmem:[#allocation2 + $0x7f0] sm:$0xff]
    %v370 = vld [vmem:[#allocation2 + $0x7f8] sm:$0xff]
    %v371 = vld [vmem:[#allocation2 + $0x800] sm:$0xff]
    %v372 = vld [vmem:[#allocation2 + $0x808] sm:$0xff]
    %v373 = vld [vmem:[#allocation2 + $0x810] sm:$0xff]
    %v374 = vld [vmem:[#allocation2 + $0x818] sm:$0xff]
    %v375 = vld [vmem:[#allocation2 + $0x820] sm:$0xff]
    %v376 = vld [vmem:[#allocation2 + $0x828] sm:$0xff]
    %v377 = vld [vmem:[#allocation2 + $0x830] sm:$0xff]
    %v378 = vld [vmem:[#allocation2 + $0x838] sm:$0xff]
    %v379 = vld [vmem:[#allocation2 + $0x840] sm:$0xff]
    %v380 = vld [vmem:[#allocation2 + $0x848] sm:$0xff]
    %v381 = vld [vmem:[#allocation2 + $0x850] sm:$0xff]
    %v382 = vld [vmem:[#allocation2 + $0x858] sm:$0xff]
    %v383 = vld [vmem:[#allocation2 + $0x860] sm:$0xff]
    %v384 = vld [vmem:[#allocation2 + $0x868] sm:$0xff]
    %v385 = vld [vmem:[#allocation2 + $0x870] sm:$0xff]
    %v386 = vld [vmem:[#allocation2 + $0x878] sm:$0xff]
    %v387 = vld [vmem:[#allocation2 + $0x880] sm:$0xff]
    %v388 = vld [vmem:[#allocation2 + $0x888] sm:$0xff]
    %v389 = vld [vmem:[#allocation2 + $0x890] sm:$0xff]
    %v390 = vld [vmem:[#allocation2 + $0x898] sm:$0xff]
    %v391 = vld [vmem:[#allocation2 + $0x8a0] sm:$0xff]
    %v392 = vld [vmem:[#allocation2 + $0x8a8] sm:$0xff]
    %v393 = vld [vmem:[#allocation2 + $0x8b0] sm:$0xff]
    %v394 = vld [vmem:[#allocation2 + $0x8b8] sm:$0xff]
    %v395 = vld [vmem:[#allocation2 + $0x8c0] sm:$0xff]
    %v396 = vld [vmem:[#allocation2 + $0x8c8] sm:$0xff]
    %v397 = vld [vmem:[#allocation2 + $0x8d0] sm:$0xff]
    %v398 = vld [vmem:[#allocation2 + $0x8d8] sm:$0xff]
    %v399 = vld [vmem:[#allocation2 + $0x8e0] sm:$0xff]
    %v400 = vld [vmem:[#allocation2 + $0x8e8] sm:$0xff]
    %v401 = vld [vmem:[#allocation2 + $0x8f0] sm:$0xff]
    %v402 = vld [vmem:[#allocation2 + $0x8f8] sm:$0xff]
    %v403 = vld [vmem:[#allocation2 + $0x900] sm:$0xff]
    %v404 = vld [vmem:[#allocation2 + $0x908] sm:$0xff]
    %v405 = vld [vmem:[#allocation2 + $0x910] sm:$0xff]
    %v406 = vld [vmem:[#allocation2 + $0x918] sm:$0xff]
    %v407 = vld [vmem:[#allocation2 + $0x920] sm:$0xff]
    %v408 = vld [vmem:[#allocation2 + $0x928] sm:$0xff]
    %v409 = vld [vmem:[#allocation2 + $0x930] sm:$0xff]
    %v410 = vld [vmem:[#allocation2 + $0x938] sm:$0xff]
    %v411 = vld [vmem:[#allocation2 + $0x940] sm:$0xff]
    %v412 = vld [vmem:[#allocation2 + $0x948] sm:$0xff]
    %v413 = vld [vmem:[#allocation2 + $0x950] sm:$0xff]
    %v414 = vld [vmem:[#allocation2 + $0x958] sm:$0xff]
    %v415 = vld [vmem:[#allocation2 + $0x960] sm:$0xff]
    %v416 = vld [vmem:[#allocation2 + $0x968] sm:$0xff]
    %v417 = vld [vmem:[#allocation2 + $0x970] sm:$0xff]
    %v418 = vld [vmem:[#allocation2 + $0x978] sm:$0xff]
    %v419 = vld [vmem:[#allocation2 + $0x980] sm:$0xff]
    %v420 = vld [vmem:[#allocation2 + $0x988] sm:$0xff]
    %v421 = vld [vmem:[#allocation2 + $0x990] sm:$0xff]
    %v422 = vld [vmem:[#allocation2 + $0x998] sm:$0xff]
    %v423 = vld [vmem:[#allocation2 + $0x9a0] sm:$0xff]
    %v424 = vld [vmem:[#allocation2 + $0x9a8] sm:$0xff]
    %v425 = vld [vmem:[#allocation2 + $0x9b0] sm:$0xff]
    %v426 = vld [vmem:[#allocation2 + $0x9b8] sm:$0xff]
    %v427 = vld [vmem:[#allocation2 + $0x9c0] sm:$0xff]
    %v428 = vld [vmem:[#allocation2 + $0x9c8] sm:$0xff]
    %v429 = vld [vmem:[#allocation2 + $0x9d0] sm:$0xff]
    %v430 = vld [vmem:[#allocation2 + $0x9d8] sm:$0xff]
    %v431 = vld [vmem:[#allocation2 + $0x9e0] sm:$0xff]
    %v432 = vld [vmem:[#allocation2 + $0x9e8] sm:$0xff]
    %v433 = vld [vmem:[#allocation2 + $0x9f0] sm:$0xff]
    %v434 = vld [vmem:[#allocation2 + $0x9f8] sm:$0xff]
    %v435 = vld [vmem:[#allocation2 + $0xa00] sm:$0xff]
    %v436 = vld [vmem:[#allocation2 + $0xa08] sm:$0xff]
    %v437 = vld [vmem:[#allocation2 + $0xa10] sm:$0xff]
    %v438 = vld [vmem:[#allocation2 + $0xa18] sm:$0xff]
    %v439 = vld [vmem:[#allocation2 + $0xa20] sm:$0xff]
    %v440 = vld [vmem:[#allocation2 + $0xa28] sm:$0xff]
    %v441 = vld [vmem:[#allocation2 + $0xa30] sm:$0xff]
    %v442 = vld [vmem:[#allocation2 + $0xa38] sm:$0xff]
    %v443 = vld [vmem:[#allocation2 + $0xa40] sm:$0xff]
    %v444 = vld [vmem:[#allocation2 + $0xa48] sm:$0xff]
    %v445 = vld [vmem:[#allocation2 + $0xa50] sm:$0xff]
    %v446 = vld [vmem:[#allocation2 + $0xa58] sm:$0xff]
    %v447 = vld [vmem:[#allocation2 + $0xa60] sm:$0xff]
    %v448 = vld [vmem:[#allocation2 + $0xa68] sm:$0xff]
    %v449 = vld [vmem:[#allocation2 + $0xa70] sm:$0xff]
    %v450 = vld [vmem:[#allocation2 + $0xa78] sm:$0xff]
    %v451 = vld [vmem:[#allocation2 + $0xa80] sm:$0xff]
    %v452 = vld [vmem:[#allocation2 + $0xa88] sm:$0xff]
    %v453 = vld [vmem:[#allocation2 + $0xa90] sm:$0xff]
    %v454 = vld [vmem:[#allocation2 + $0xa98] sm:$0xff]
    %v455 = vld [vmem:[#allocation2 + $0xaa0] sm:$0xff]
    %v456 = vld [vmem:[#allocation2 + $0xaa8] sm:$0xff]
    %v457 = vld [vmem:[#allocation2 + $0xab0] sm:$0xff]
    %v458 = vld [vmem:[#allocation2 + $0xab8] sm:$0xff]
    %v459 = vld [vmem:[#allocation2 + $0xac0] sm:$0xff]
    %v460 = vld [vmem:[#allocation2 + $0xac8] sm:$0xff]
    %v461 = vld [vmem:[#allocation2 + $0xad0] sm:$0xff]
    %v462 = vld [vmem:[#allocation2 + $0xad8] sm:$0xff]
    %v463 = vld [vmem:[#allocation2 + $0xae0] sm:$0xff]
    %v464 = vld [vmem:[#allocation2 + $0xae8] sm:$0xff]
    %v465 = vld [vmem:[#allocation2 + $0xaf0] sm:$0xff]
    %v466 = vld [vmem:[#allocation2 + $0xaf8] sm:$0xff]
    %v467 = vld [vmem:[#allocation2 + $0xb00] sm:$0xff]
    %v468 = vld [vmem:[#allocation2 + $0xb08] sm:$0xff]
    %v469 = vld [vmem:[#allocation2 + $0xb10] sm:$0xff]
    %v470 = vld [vmem:[#allocation2 + $0xb18] sm:$0xff]
    %v471 = vld [vmem:[#allocation2 + $0xb20] sm:$0xff]
    %v472 = vld [vmem:[#allocation2 + $0xb28] sm:$0xff]
    %v473 = vld [vmem:[#allocation2 + $0xb30] sm:$0xff]
    %v474 = vld [vmem:[#allocation2 + $0xb38] sm:$0xff]
    %v475 = vld [vmem:[#allocation2 + $0xb40] sm:$0xff]
    %v476 = vld [vmem:[#allocation2 + $0xb48] sm:$0xff]
    %v477 = vld [vmem:[#allocation2 + $0xb50] sm:$0xff]
    %v478 = vld [vmem:[#allocation2 + $0xb58] sm:$0xff]
    %v479 = vld [vmem:[#allocation2 + $0xb60] sm:$0xff]
    %v480 = vld [vmem:[#allocation2 + $0xb68] sm:$0xff]
    %v481 = vld [vmem:[#allocation2 + $0xb70] sm:$0xff]
    %v482 = vld [vmem:[#allocation2 + $0xb78] sm:$0xff]
    %v483 = vld [vmem:[#allocation2 + $0xb80] sm:$0xff]
    %v484 = vld [vmem:[#allocation2 + $0xb88] sm:$0xff]
    %v485 = vld [vmem:[#allocation2 + $0xb90] sm:$0xff]
    %v486 = vld [vmem:[#allocation2 + $0xb98] sm:$0xff]
    %v487 = vld [vmem:[#allocation2 + $0xba0] sm:$0xff]
    %v488 = vld [vmem:[#allocation2 + $0xba8] sm:$0xff]
    %v489 = vld [vmem:[#allocation2 + $0xbb0] sm:$0xff]
    %v490 = vld [vmem:[#allocation2 + $0xbb8] sm:$0xff]
    %v491 = vld [vmem:[#allocation2 + $0xbc0] sm:$0xff]
    %v492 = vld [vmem:[#allocation2 + $0xbc8] sm:$0xff]
    %v493 = vld [vmem:[#allocation2 + $0xbd0] sm:$0xff]
    %v494 = vld [vmem:[#allocation2 + $0xbd8] sm:$0xff]
    %v495 = vld [vmem:[#allocation2 + $0xbe0] sm:$0xff]
    %v496 = vld [vmem:[#allocation2 + $0xbe8] sm:$0xff]
    %v497 = vld [vmem:[#allocation2 + $0xbf0] sm:$0xff]
    %v498 = vld [vmem:[#allocation2 + $0xbf8] sm:$0xff]
    %v883 = vunpack.c.l.b16 %v115
    %v884 = vunpack.c.h.b16 %v115
    %v885 = vunpack.c.l.b16 %v116
    %v886 = vunpack.c.h.b16 %v116
    %v887 = vunpack.c.l.b16 %v117
    %v888 = vunpack.c.h.b16 %v117
    %v889 = vunpack.c.l.b16 %v118
    %v890 = vunpack.c.h.b16 %v118
    %v891 = vunpack.c.l.b16 %v119
    %v892 = vunpack.c.h.b16 %v119
    %v893 = vunpack.c.l.b16 %v120
    %v894 = vunpack.c.h.b16 %v120
    %v895 = vunpack.c.l.b16 %v121
    %v896 = vunpack.c.h.b16 %v121
    %v897 = vunpack.c.l.b16 %v122
    %v898 = vunpack.c.h.b16 %v122
    %v899 = vunpack.c.l.b16 %v123
    %v900 = vunpack.c.h.b16 %v123
    %v901 = vunpack.c.l.b16 %v124
    %v902 = vunpack.c.h.b16 %v124
    %v903 = vunpack.c.l.b16 %v125
    %v904 = vunpack.c.h.b16 %v125
    %v905 = vunpack.c.l.b16 %v126
    %v906 = vunpack.c.h.b16 %v126
    %v907 = vunpack.c.l.b16 %v127
    %v908 = vunpack.c.h.b16 %v127
    %v909 = vunpack.c.l.b16 %v128
    %v910 = vunpack.c.h.b16 %v128
    %v911 = vunpack.c.l.b16 %v129
    %v912 = vunpack.c.h.b16 %v129
    %v913 = vunpack.c.l.b16 %v130
    %v914 = vunpack.c.h.b16 %v130
    %v915 = vunpack.c.l.b16 %v131
    %v916 = vunpack.c.h.b16 %v131
    %v917 = vunpack.c.l.b16 %v132
    %v918 = vunpack.c.h.b16 %v132
    %v919 = vunpack.c.l.b16 %v133
    %v920 = vunpack.c.h.b16 %v133
    %v921 = vunpack.c.l.b16 %v134
    %v922 = vunpack.c.h.b16 %v134
    %v923 = vunpack.c.l.b16 %v135
    %v924 = vunpack.c.h.b16 %v135
    %v925 = vunpack.c.l.b16 %v136
    %v926 = vunpack.c.h.b16 %v136
    %v927 = vunpack.c.l.b16 %v137
    %v928 = vunpack.c.h.b16 %v137
    %v929 = vunpack.c.l.b16 %v138
    %v930 = vunpack.c.h.b16 %v138
    %v931 = vunpack.c.l.b16 %v139
    %v932 = vunpack.c.h.b16 %v139
    %v933 = vunpack.c.l.b16 %v140
    %v934 = vunpack.c.h.b16 %v140
    %v935 = vunpack.c.l.b16 %v141
    %v936 = vunpack.c.h.b16 %v141
    %v937 = vunpack.c.l.b16 %v142
    %v938 = vunpack.c.h.b16 %v142
    %v939 = vunpack.c.l.b16 %v143
    %v940 = vunpack.c.h.b16 %v143
    %v941 = vunpack.c.l.b16 %v144
    %v942 = vunpack.c.h.b16 %v144
    %v943 = vunpack.c.l.b16 %v145
    %v944 = vunpack.c.h.b16 %v145
    %v945 = vunpack.c.l.b16 %v146
    %v946 = vunpack.c.h.b16 %v146
    %v947 = vunpack.c.l.b16 %v147
    %v948 = vunpack.c.h.b16 %v147
    %v949 = vunpack.c.l.b16 %v148
    %v950 = vunpack.c.h.b16 %v148
    %v951 = vunpack.c.l.b16 %v149
    %v952 = vunpack.c.h.b16 %v149
    %v953 = vunpack.c.l.b16 %v150
    %v954 = vunpack.c.h.b16 %v150
    %v955 = vunpack.c.l.b16 %v151
    %v956 = vunpack.c.h.b16 %v151
    %v957 = vunpack.c.l.b16 %v152
    %v958 = vunpack.c.h.b16 %v152
    %v959 = vunpack.c.l.b16 %v153
    %v960 = vunpack.c.h.b16 %v153
    %v961 = vunpack.c.l.b16 %v154
    %v962 = vunpack.c.h.b16 %v154
    %v963 = vunpack.c.l.b16 %v155
    %v964 = vunpack.c.h.b16 %v155
    %v965 = vunpack.c.l.b16 %v156
    %v966 = vunpack.c.h.b16 %v156
    %v967 = vunpack.c.l.b16 %v157
    %v968 = vunpack.c.h.b16 %v157
    %v969 = vunpack.c.l.b16 %v158
    %v970 = vunpack.c.h.b16 %v158
    %v971 = vunpack.c.l.b16 %v159
    %v972 = vunpack.c.h.b16 %v159
    %v973 = vunpack.c.l.b16 %v160
    %v974 = vunpack.c.h.b16 %v160
    %v975 = vunpack.c.l.b16 %v161
    %v976 = vunpack.c.h.b16 %v161
    %v977 = vunpack.c.l.b16 %v162
    %v978 = vunpack.c.h.b16 %v162
    %v979 = vunpack.c.l.b16 %v163
    %v980 = vunpack.c.h.b16 %v163
    %v981 = vunpack.c.l.b16 %v164
    %v982 = vunpack.c.h.b16 %v164
    %v983 = vunpack.c.l.b16 %v165
    %v984 = vunpack.c.h.b16 %v165
    %v985 = vunpack.c.l.b16 %v166
    %v986 = vunpack.c.h.b16 %v166
    %v987 = vunpack.c.l.b16 %v167
    %v988 = vunpack.c.h.b16 %v167
    %v989 = vunpack.c.l.b16 %v168
    %v990 = vunpack.c.h.b16 %v168
    %v991 = vunpack.c.l.b16 %v169
    %v992 = vunpack.c.h.b16 %v169
    %v993 = vunpack.c.l.b16 %v170
    %v994 = vunpack.c.h.b16 %v170
    %v995 = vunpack.c.l.b16 %v171
    %v996 = vunpack.c.h.b16 %v171
    %v997 = vunpack.c.l.b16 %v172
    %v998 = vunpack.c.h.b16 %v172
    %v999 = vunpack.c.l.b16 %v173
    %v1000 = vunpack.c.h.b16 %v173
    %v1001 = vunpack.c.l.b16 %v174
    %v1002 = vunpack.c.h.b16 %v174
    %v1003 = vunpack.c.l.b16 %v175
    %v1004 = vunpack.c.h.b16 %v175
    %v1005 = vunpack.c.l.b16 %v176
    %v1006 = vunpack.c.h.b16 %v176
    %v1007 = vunpack.c.l.b16 %v177
    %v1008 = vunpack.c.h.b16 %v177
    %v1009 = vunpack.c.l.b16 %v178
    %v1010 = vunpack.c.h.b16 %v178
    %v1011 = vunpack.c.l.b16 %v179
    %v1012 = vunpack.c.h.b16 %v179
    %v1013 = vunpack.c.l.b16 %v180
    %v1014 = vunpack.c.h.b16 %v180
    %v1015 = vunpack.c.l.b16 %v181
    %v1016 = vunpack.c.h.b16 %v181
    %v1017 = vunpack.c.l.b16 %v182
    %v1018 = vunpack.c.h.b16 %v182
    %v1019 = vunpack.c.l.b16 %v183
    %v1020 = vunpack.c.h.b16 %v183
    %v1021 = vunpack.c.l.b16 %v184
    %v1022 = vunpack.c.h.b16 %v184
    %v1023 = vunpack.c.l.b16 %v185
    %v1024 = vunpack.c.h.b16 %v185
    %v1025 = vunpack.c.l.b16 %v186
    %v1026 = vunpack.c.h.b16 %v186
    %v1027 = vunpack.c.l.b16 %v187
    %v1028 = vunpack.c.h.b16 %v187
    %v1029 = vunpack.c.l.b16 %v188
    %v1030 = vunpack.c.h.b16 %v188
    %v1031 = vunpack.c.l.b16 %v189
    %v1032 = vunpack.c.h.b16 %v189
    %v1033 = vunpack.c.l.b16 %v190
    %v1034 = vunpack.c.h.b16 %v190
    %v1035 = vunpack.c.l.b16 %v191
    %v1036 = vunpack.c.h.b16 %v191
    %v1037 = vunpack.c.l.b16 %v192
    %v1038 = vunpack.c.h.b16 %v192
    %v1039 = vunpack.c.l.b16 %v193
    %v1040 = vunpack.c.h.b16 %v193
    %v1041 = vunpack.c.l.b16 %v194
    %v1042 = vunpack.c.h.b16 %v194
    %v1043 = vunpack.c.l.b16 %v195
    %v1044 = vunpack.c.h.b16 %v195
    %v1045 = vunpack.c.l.b16 %v196
    %v1046 = vunpack.c.h.b16 %v196
    %v1047 = vunpack.c.l.b16 %v197
    %v1048 = vunpack.c.h.b16 %v197
    %v1049 = vunpack.c.l.b16 %v198
    %v1050 = vunpack.c.h.b16 %v198
    %v1051 = vunpack.c.l.b16 %v199
    %v1052 = vunpack.c.h.b16 %v199
    %v1053 = vunpack.c.l.b16 %v200
    %v1054 = vunpack.c.h.b16 %v200
    %v1055 = vunpack.c.l.b16 %v201
    %v1056 = vunpack.c.h.b16 %v201
    %v1057 = vunpack.c.l.b16 %v202
    %v1058 = vunpack.c.h.b16 %v202
    %v1059 = vunpack.c.l.b16 %v203
    %v1060 = vunpack.c.h.b16 %v203
    %v1061 = vunpack.c.l.b16 %v204
    %v1062 = vunpack.c.h.b16 %v204
    %v1063 = vunpack.c.l.b16 %v205
    %v1064 = vunpack.c.h.b16 %v205
    %v1065 = vunpack.c.l.b16 %v206
    %v1066 = vunpack.c.h.b16 %v206
    %v1067 = vunpack.c.l.b16 %v207
    %v1068 = vunpack.c.h.b16 %v207
    %v1069 = vunpack.c.l.b16 %v208
    %v1070 = vunpack.c.h.b16 %v208
    %v1071 = vunpack.c.l.b16 %v209
    %v1072 = vunpack.c.h.b16 %v209
    %v1073 = vunpack.c.l.b16 %v210
    %v1074 = vunpack.c.h.b16 %v210
    %v1075 = vunpack.c.l.b16 %v211
    %v1076 = vunpack.c.h.b16 %v211
    %v1077 = vunpack.c.l.b16 %v212
    %v1078 = vunpack.c.h.b16 %v212
    %v1079 = vunpack.c.l.b16 %v213
    %v1080 = vunpack.c.h.b16 %v213
    %v1081 = vunpack.c.l.b16 %v214
    %v1082 = vunpack.c.h.b16 %v214
    %v1083 = vunpack.c.l.b16 %v215
    %v1084 = vunpack.c.h.b16 %v215
    %v1085 = vunpack.c.l.b16 %v216
    %v1086 = vunpack.c.h.b16 %v216
    %v1087 = vunpack.c.l.b16 %v217
    %v1088 = vunpack.c.h.b16 %v217
    %v1089 = vunpack.c.l.b16 %v218
    %v1090 = vunpack.c.h.b16 %v218
    %v1091 = vunpack.c.l.b16 %v219
    %v1092 = vunpack.c.h.b16 %v219
    %v1093 = vunpack.c.l.b16 %v220
    %v1094 = vunpack.c.h.b16 %v220
    %v1095 = vunpack.c.l.b16 %v221
    %v1096 = vunpack.c.h.b16 %v221
    %v1097 = vunpack.c.l.b16 %v222
    %v1098 = vunpack.c.h.b16 %v222
    %v1099 = vunpack.c.l.b16 %v223
    %v1100 = vunpack.c.h.b16 %v223
    %v1101 = vunpack.c.l.b16 %v224
    %v1102 = vunpack.c.h.b16 %v224
    %v1103 = vunpack.c.l.b16 %v225
    %v1104 = vunpack.c.h.b16 %v225
    %v1105 = vunpack.c.l.b16 %v226
    %v1106 = vunpack.c.h.b16 %v226
    %v1107 = vunpack.c.l.b16 %v227
    %v1108 = vunpack.c.h.b16 %v227
    %v1109 = vunpack.c.l.b16 %v228
    %v1110 = vunpack.c.h.b16 %v228
    %v1111 = vunpack.c.l.b16 %v229
    %v1112 = vunpack.c.h.b16 %v229
    %v1113 = vunpack.c.l.b16 %v230
    %v1114 = vunpack.c.h.b16 %v230
    %v1115 = vunpack.c.l.b16 %v231
    %v1116 = vunpack.c.h.b16 %v231
    %v1117 = vunpack.c.l.b16 %v232
    %v1118 = vunpack.c.h.b16 %v232
    %v1119 = vunpack.c.l.b16 %v233
    %v1120 = vunpack.c.h.b16 %v233
    %v1121 = vunpack.c.l.b16 %v234
    %v1122 = vunpack.c.h.b16 %v234
    %v1123 = vunpack.c.l.b16 %v235
    %v1124 = vunpack.c.h.b16 %v235
    %v1125 = vunpack.c.l.b16 %v236
    %v1126 = vunpack.c.h.b16 %v236
    %v1127 = vunpack.c.l.b16 %v237
    %v1128 = vunpack.c.h.b16 %v237
    %v1129 = vunpack.c.l.b16 %v238
    %v1130 = vunpack.c.h.b16 %v238
    %v1131 = vunpack.c.l.b16 %v239
    %v1132 = vunpack.c.h.b16 %v239
    %v1133 = vunpack.c.l.b16 %v240
    %v1134 = vunpack.c.h.b16 %v240
    %v1135 = vunpack.c.l.b16 %v241
    %v1136 = vunpack.c.h.b16 %v241
    %v1137 = vunpack.c.l.b16 %v242
    %v1138 = vunpack.c.h.b16 %v242
    %v1139 = vunpack.c.l.b16 %v243
    %v1140 = vunpack.c.h.b16 %v243
    %v1141 = vunpack.c.l.b16 %v244
    %v1142 = vunpack.c.h.b16 %v244
    %v1143 = vunpack.c.l.b16 %v245
    %v1144 = vunpack.c.h.b16 %v245
    %v1145 = vunpack.c.l.b16 %v246
    %v1146 = vunpack.c.h.b16 %v246
    %v1147 = vunpack.c.l.b16 %v247
    %v1148 = vunpack.c.h.b16 %v247
    %v1149 = vunpack.c.l.b16 %v248
    %v1150 = vunpack.c.h.b16 %v248
    %v1151 = vunpack.c.l.b16 %v249
    %v1152 = vunpack.c.h.b16 %v249
    %v1153 = vunpack.c.l.b16 %v250
    %v1154 = vunpack.c.h.b16 %v250
    %v1155 = vunpack.c.l.b16 %v251
    %v1156 = vunpack.c.h.b16 %v251
    %v1157 = vunpack.c.l.b16 %v252
    %v1158 = vunpack.c.h.b16 %v252
    %v1159 = vunpack.c.l.b16 %v253
    %v1160 = vunpack.c.h.b16 %v253
    %v1161 = vunpack.c.l.b16 %v254
    %v1162 = vunpack.c.h.b16 %v254
    %v1163 = vunpack.c.l.b16 %v255
    %v1164 = vunpack.c.h.b16 %v255
    %v1165 = vunpack.c.l.b16 %v256
    %v1166 = vunpack.c.h.b16 %v256
    %v1167 = vunpack.c.l.b16 %v257
    %v1168 = vunpack.c.h.b16 %v257
    %v1169 = vunpack.c.l.b16 %v258
    %v1170 = vunpack.c.h.b16 %v258
    %v1171 = vunpack.c.l.b16 %v259
    %v1172 = vunpack.c.h.b16 %v259
    %v1173 = vunpack.c.l.b16 %v260
    %v1174 = vunpack.c.h.b16 %v260
    %v1175 = vunpack.c.l.b16 %v261
    %v1176 = vunpack.c.h.b16 %v261
    %v1177 = vunpack.c.l.b16 %v262
    %v1178 = vunpack.c.h.b16 %v262
    %v1179 = vunpack.c.l.b16 %v263
    %v1180 = vunpack.c.h.b16 %v263
    %v1181 = vunpack.c.l.b16 %v264
    %v1182 = vunpack.c.h.b16 %v264
    %v1183 = vunpack.c.l.b16 %v265
    %v1184 = vunpack.c.h.b16 %v265
    %v1185 = vunpack.c.l.b16 %v266
    %v1186 = vunpack.c.h.b16 %v266
    %v1187 = vunpack.c.l.b16 %v267
    %v1188 = vunpack.c.h.b16 %v267
    %v1189 = vunpack.c.l.b16 %v268
    %v1190 = vunpack.c.h.b16 %v268
    %v1191 = vunpack.c.l.b16 %v269
    %v1192 = vunpack.c.h.b16 %v269
    %v1193 = vunpack.c.l.b16 %v270
    %v1194 = vunpack.c.h.b16 %v270
    %v1195 = vunpack.c.l.b16 %v271
    %v1196 = vunpack.c.h.b16 %v271
    %v1197 = vunpack.c.l.b16 %v272
    %v1198 = vunpack.c.h.b16 %v272
    %v1199 = vunpack.c.l.b16 %v273
    %v1200 = vunpack.c.h.b16 %v273
    %v1201 = vunpack.c.l.b16 %v274
    %v1202 = vunpack.c.h.b16 %v274
    %v1203 = vunpack.c.l.b16 %v275
    %v1204 = vunpack.c.h.b16 %v275
    %v1205 = vunpack.c.l.b16 %v276
    %v1206 = vunpack.c.h.b16 %v276
    %v1207 = vunpack.c.l.b16 %v277
    %v1208 = vunpack.c.h.b16 %v277
    %v1209 = vunpack.c.l.b16 %v278
    %v1210 = vunpack.c.h.b16 %v278
    %v1211 = vunpack.c.l.b16 %v279
    %v1212 = vunpack.c.h.b16 %v279
    %v1213 = vunpack.c.l.b16 %v280
    %v1214 = vunpack.c.h.b16 %v280
    %v1215 = vunpack.c.l.b16 %v281
    %v1216 = vunpack.c.h.b16 %v281
    %v1217 = vunpack.c.l.b16 %v282
    %v1218 = vunpack.c.h.b16 %v282
    %v1219 = vunpack.c.l.b16 %v283
    %v1220 = vunpack.c.h.b16 %v283
    %v1221 = vunpack.c.l.b16 %v284
    %v1222 = vunpack.c.h.b16 %v284
    %v1223 = vunpack.c.l.b16 %v285
    %v1224 = vunpack.c.h.b16 %v285
    %v1225 = vunpack.c.l.b16 %v286
    %v1226 = vunpack.c.h.b16 %v286
    %v1227 = vunpack.c.l.b16 %v287
    %v1228 = vunpack.c.h.b16 %v287
    %v1229 = vunpack.c.l.b16 %v288
    %v1230 = vunpack.c.h.b16 %v288
    %v1231 = vunpack.c.l.b16 %v289
    %v1232 = vunpack.c.h.b16 %v289
    %v1233 = vunpack.c.l.b16 %v290
    %v1234 = vunpack.c.h.b16 %v290
    %v1235 = vunpack.c.l.b16 %v291
    %v1236 = vunpack.c.h.b16 %v291
    %v1237 = vunpack.c.l.b16 %v292
    %v1238 = vunpack.c.h.b16 %v292
    %v1239 = vunpack.c.l.b16 %v293
    %v1240 = vunpack.c.h.b16 %v293
    %v1241 = vunpack.c.l.b16 %v294
    %v1242 = vunpack.c.h.b16 %v294
    %v1243 = vunpack.c.l.b16 %v295
    %v1244 = vunpack.c.h.b16 %v295
    %v1245 = vunpack.c.l.b16 %v296
    %v1246 = vunpack.c.h.b16 %v296
    %v1247 = vunpack.c.l.b16 %v297
    %v1248 = vunpack.c.h.b16 %v297
    %v1249 = vunpack.c.l.b16 %v298
    %v1250 = vunpack.c.h.b16 %v298
    %v1251 = vunpack.c.l.b16 %v299
    %v1252 = vunpack.c.h.b16 %v299
    %v1253 = vunpack.c.l.b16 %v300
    %v1254 = vunpack.c.h.b16 %v300
    %v1255 = vunpack.c.l.b16 %v301
    %v1256 = vunpack.c.h.b16 %v301
    %v1257 = vunpack.c.l.b16 %v302
    %v1258 = vunpack.c.h.b16 %v302
    %v1259 = vunpack.c.l.b16 %v303
    %v1260 = vunpack.c.h.b16 %v303
    %v1261 = vunpack.c.l.b16 %v304
    %v1262 = vunpack.c.h.b16 %v304
    %v1263 = vunpack.c.l.b16 %v305
    %v1264 = vunpack.c.h.b16 %v305
    %v1265 = vunpack.c.l.b16 %v306
    %v1266 = vunpack.c.h.b16 %v306
    %v1267 = vunpack.c.l.b16 %v307
    %v1268 = vunpack.c.h.b16 %v307
    %v1269 = vunpack.c.l.b16 %v308
    %v1270 = vunpack.c.h.b16 %v308
    %v1271 = vunpack.c.l.b16 %v309
    %v1272 = vunpack.c.h.b16 %v309
    %v1273 = vunpack.c.l.b16 %v310
    %v1274 = vunpack.c.h.b16 %v310
    %v1275 = vunpack.c.l.b16 %v311
    %v1276 = vunpack.c.h.b16 %v311
    %v1277 = vunpack.c.l.b16 %v312
    %v1278 = vunpack.c.h.b16 %v312
    %v1279 = vunpack.c.l.b16 %v313
    %v1280 = vunpack.c.h.b16 %v313
    %v1281 = vunpack.c.l.b16 %v314
    %v1282 = vunpack.c.h.b16 %v314
    %v1283 = vunpack.c.l.b16 %v315
    %v1284 = vunpack.c.h.b16 %v315
    %v1285 = vunpack.c.l.b16 %v316
    %v1286 = vunpack.c.h.b16 %v316
    %v1287 = vunpack.c.l.b16 %v317
    %v1288 = vunpack.c.h.b16 %v317
    %v1289 = vunpack.c.l.b16 %v318
    %v1290 = vunpack.c.h.b16 %v318
    %v1291 = vunpack.c.l.b16 %v319
    %v1292 = vunpack.c.h.b16 %v319
    %v1293 = vunpack.c.l.b16 %v320
    %v1294 = vunpack.c.h.b16 %v320
    %v1295 = vunpack.c.l.b16 %v321
    %v1296 = vunpack.c.h.b16 %v321
    %v1297 = vunpack.c.l.b16 %v322
    %v1298 = vunpack.c.h.b16 %v322
    %v1299 = vunpack.c.l.b16 %v323
    %v1300 = vunpack.c.h.b16 %v323
    %v1301 = vunpack.c.l.b16 %v324
    %v1302 = vunpack.c.h.b16 %v324
    %v1303 = vunpack.c.l.b16 %v325
    %v1304 = vunpack.c.h.b16 %v325
    %v1305 = vunpack.c.l.b16 %v326
    %v1306 = vunpack.c.h.b16 %v326
    %v1307 = vunpack.c.l.b16 %v327
    %v1308 = vunpack.c.h.b16 %v327
    %v1309 = vunpack.c.l.b16 %v328
    %v1310 = vunpack.c.h.b16 %v328
    %v1311 = vunpack.c.l.b16 %v329
    %v1312 = vunpack.c.h.b16 %v329
    %v1313 = vunpack.c.l.b16 %v330
    %v1314 = vunpack.c.h.b16 %v330
    %v1315 = vunpack.c.l.b16 %v331
    %v1316 = vunpack.c.h.b16 %v331
    %v1317 = vunpack.c.l.b16 %v332
    %v1318 = vunpack.c.h.b16 %v332
    %v1319 = vunpack.c.l.b16 %v333
    %v1320 = vunpack.c.h.b16 %v333
    %v1321 = vunpack.c.l.b16 %v334
    %v1322 = vunpack.c.h.b16 %v334
    %v1323 = vunpack.c.l.b16 %v335
    %v1324 = vunpack.c.h.b16 %v335
    %v1325 = vunpack.c.l.b16 %v336
    %v1326 = vunpack.c.h.b16 %v336
    %v1327 = vunpack.c.l.b16 %v337
    %v1328 = vunpack.c.h.b16 %v337
    %v1329 = vunpack.c.l.b16 %v338
    %v1330 = vunpack.c.h.b16 %v338
    %v1331 = vunpack.c.l.b16 %v339
    %v1332 = vunpack.c.h.b16 %v339
    %v1333 = vunpack.c.l.b16 %v340
    %v1334 = vunpack.c.h.b16 %v340
    %v1335 = vunpack.c.l.b16 %v341
    %v1336 = vunpack.c.h.b16 %v341
    %v1337 = vunpack.c.l.b16 %v342
    %v1338 = vunpack.c.h.b16 %v342
    %v1339 = vunpack.c.l.b16 %v343
    %v1340 = vunpack.c.h.b16 %v343
    %v1341 = vunpack.c.l.b16 %v344
    %v1342 = vunpack.c.h.b16 %v344
    %v1343 = vunpack.c.l.b16 %v345
    %v1344 = vunpack.c.h.b16 %v345
    %v1345 = vunpack.c.l.b16 %v346
    %v1346 = vunpack.c.h.b16 %v346
    %v1347 = vunpack.c.l.b16 %v347
    %v1348 = vunpack.c.h.b16 %v347
    %v1349 = vunpack.c.l.b16 %v348
    %v1350 = vunpack.c.h.b16 %v348
    %v1351 = vunpack.c.l.b16 %v349
    %v1352 = vunpack.c.h.b16 %v349
    %v1353 = vunpack.c.l.b16 %v350
    %v1354 = vunpack.c.h.b16 %v350
    %v1355 = vunpack.c.l.b16 %v351
    %v1356 = vunpack.c.h.b16 %v351
    %v1357 = vunpack.c.l.b16 %v352
    %v1358 = vunpack.c.h.b16 %v352
    %v1359 = vunpack.c.l.b16 %v353
    %v1360 = vunpack.c.h.b16 %v353
    %v1361 = vunpack.c.l.b16 %v354
    %v1362 = vunpack.c.h.b16 %v354
    %v1363 = vunpack.c.l.b16 %v355
    %v1364 = vunpack.c.h.b16 %v355
    %v1365 = vunpack.c.l.b16 %v356
    %v1366 = vunpack.c.h.b16 %v356
    %v1367 = vunpack.c.l.b16 %v357
    %v1368 = vunpack.c.h.b16 %v357
    %v1369 = vunpack.c.l.b16 %v358
    %v1370 = vunpack.c.h.b16 %v358
    %v1371 = vunpack.c.l.b16 %v359
    %v1372 = vunpack.c.h.b16 %v359
    %v1373 = vunpack.c.l.b16 %v360
    %v1374 = vunpack.c.h.b16 %v360
    %v1375 = vunpack.c.l.b16 %v361
    %v1376 = vunpack.c.h.b16 %v361
    %v1377 = vunpack.c.l.b16 %v362
    %v1378 = vunpack.c.h.b16 %v362
    %v1379 = vunpack.c.l.b16 %v363
    %v1380 = vunpack.c.h.b16 %v363
    %v1381 = vunpack.c.l.b16 %v364
    %v1382 = vunpack.c.h.b16 %v364
    %v1383 = vunpack.c.l.b16 %v365
    %v1384 = vunpack.c.h.b16 %v365
    %v1385 = vunpack.c.l.b16 %v366
    %v1386 = vunpack.c.h.b16 %v366
    %v1387 = vunpack.c.l.b16 %v367
    %v1388 = vunpack.c.h.b16 %v367
    %v1389 = vunpack.c.l.b16 %v368
    %v1390 = vunpack.c.h.b16 %v368
    %v1391 = vunpack.c.l.b16 %v369
    %v1392 = vunpack.c.h.b16 %v369
    %v1393 = vunpack.c.l.b16 %v370
    %v1394 = vunpack.c.h.b16 %v370
    %v1395 = vunpack.c.l.b16 %v371
    %v1396 = vunpack.c.h.b16 %v371
    %v1397 = vunpack.c.l.b16 %v372
    %v1398 = vunpack.c.h.b16 %v372
    %v1399 = vunpack.c.l.b16 %v373
    %v1400 = vunpack.c.h.b16 %v373
    %v1401 = vunpack.c.l.b16 %v374
    %v1402 = vunpack.c.h.b16 %v374
    %v1403 = vunpack.c.l.b16 %v375
    %v1404 = vunpack.c.h.b16 %v375
    %v1405 = vunpack.c.l.b16 %v376
    %v1406 = vunpack.c.h.b16 %v376
    %v1407 = vunpack.c.l.b16 %v377
    %v1408 = vunpack.c.h.b16 %v377
    %v1409 = vunpack.c.l.b16 %v378
    %v1410 = vunpack.c.h.b16 %v378
    %v1411 = vunpack.c.l.b16 %v379
    %v1412 = vunpack.c.h.b16 %v379
    %v1413 = vunpack.c.l.b16 %v380
    %v1414 = vunpack.c.h.b16 %v380
    %v1415 = vunpack.c.l.b16 %v381
    %v1416 = vunpack.c.h.b16 %v381
    %v1417 = vunpack.c.l.b16 %v382
    %v1418 = vunpack.c.h.b16 %v382
    %v1419 = vunpack.c.l.b16 %v383
    %v1420 = vunpack.c.h.b16 %v383
    %v1421 = vunpack.c.l.b16 %v384
    %v1422 = vunpack.c.h.b16 %v384
    %v1423 = vunpack.c.l.b16 %v385
    %v1424 = vunpack.c.h.b16 %v385
    %v1425 = vunpack.c.l.b16 %v386
    %v1426 = vunpack.c.h.b16 %v386
    %v1427 = vunpack.c.l.b16 %v387
    %v1428 = vunpack.c.h.b16 %v387
    %v1429 = vunpack.c.l.b16 %v388
    %v1430 = vunpack.c.h.b16 %v388
    %v1431 = vunpack.c.l.b16 %v389
    %v1432 = vunpack.c.h.b16 %v389
    %v1433 = vunpack.c.l.b16 %v390
    %v1434 = vunpack.c.h.b16 %v390
    %v1435 = vunpack.c.l.b16 %v391
    %v1436 = vunpack.c.h.b16 %v391
    %v1437 = vunpack.c.l.b16 %v392
    %v1438 = vunpack.c.h.b16 %v392
    %v1439 = vunpack.c.l.b16 %v393
    %v1440 = vunpack.c.h.b16 %v393
    %v1441 = vunpack.c.l.b16 %v394
    %v1442 = vunpack.c.h.b16 %v394
    %v1443 = vunpack.c.l.b16 %v395
    %v1444 = vunpack.c.h.b16 %v395
    %v1445 = vunpack.c.l.b16 %v396
    %v1446 = vunpack.c.h.b16 %v396
    %v1447 = vunpack.c.l.b16 %v397
    %v1448 = vunpack.c.h.b16 %v397
    %v1449 = vunpack.c.l.b16 %v398
    %v1450 = vunpack.c.h.b16 %v398
    %v1451 = vunpack.c.l.b16 %v399
    %v1452 = vunpack.c.h.b16 %v399
    %v1453 = vunpack.c.l.b16 %v400
    %v1454 = vunpack.c.h.b16 %v400
    %v1455 = vunpack.c.l.b16 %v401
    %v1456 = vunpack.c.h.b16 %v401
    %v1457 = vunpack.c.l.b16 %v402
    %v1458 = vunpack.c.h.b16 %v402
    %v1459 = vunpack.c.l.b16 %v403
    %v1460 = vunpack.c.h.b16 %v403
    %v1461 = vunpack.c.l.b16 %v404
    %v1462 = vunpack.c.h.b16 %v404
    %v1463 = vunpack.c.l.b16 %v405
    %v1464 = vunpack.c.h.b16 %v405
    %v1465 = vunpack.c.l.b16 %v406
    %v1466 = vunpack.c.h.b16 %v406
    %v1467 = vunpack.c.l.b16 %v407
    %v1468 = vunpack.c.h.b16 %v407
    %v1469 = vunpack.c.l.b16 %v408
    %v1470 = vunpack.c.h.b16 %v408
    %v1471 = vunpack.c.l.b16 %v409
    %v1472 = vunpack.c.h.b16 %v409
    %v1473 = vunpack.c.l.b16 %v410
    %v1474 = vunpack.c.h.b16 %v410
    %v1475 = vunpack.c.l.b16 %v411
    %v1476 = vunpack.c.h.b16 %v411
    %v1477 = vunpack.c.l.b16 %v412
    %v1478 = vunpack.c.h.b16 %v412
    %v1479 = vunpack.c.l.b16 %v413
    %v1480 = vunpack.c.h.b16 %v413
    %v1481 = vunpack.c.l.b16 %v414
    %v1482 = vunpack.c.h.b16 %v414
    %v1483 = vunpack.c.l.b16 %v415
    %v1484 = vunpack.c.h.b16 %v415
    %v1485 = vunpack.c.l.b16 %v416
    %v1486 = vunpack.c.h.b16 %v416
    %v1487 = vunpack.c.l.b16 %v417
    %v1488 = vunpack.c.h.b16 %v417
    %v1489 = vunpack.c.l.b16 %v418
    %v1490 = vunpack.c.h.b16 %v418
    %v1491 = vunpack.c.l.b16 %v419
    %v1492 = vunpack.c.h.b16 %v419
    %v1493 = vunpack.c.l.b16 %v420
    %v1494 = vunpack.c.h.b16 %v420
    %v1495 = vunpack.c.l.b16 %v421
    %v1496 = vunpack.c.h.b16 %v421
    %v1497 = vunpack.c.l.b16 %v422
    %v1498 = vunpack.c.h.b16 %v422
    %v1499 = vunpack.c.l.b16 %v423
    %v1500 = vunpack.c.h.b16 %v423
    %v1501 = vunpack.c.l.b16 %v424
    %v1502 = vunpack.c.h.b16 %v424
    %v1503 = vunpack.c.l.b16 %v425
    %v1504 = vunpack.c.h.b16 %v425
    %v1505 = vunpack.c.l.b16 %v426
    %v1506 = vunpack.c.h.b16 %v426
    %v1507 = vunpack.c.l.b16 %v427
    %v1508 = vunpack.c.h.b16 %v427
    %v1509 = vunpack.c.l.b16 %v428
    %v1510 = vunpack.c.h.b16 %v428
    %v1511 = vunpack.c.l.b16 %v429
    %v1512 = vunpack.c.h.b16 %v429
    %v1513 = vunpack.c.l.b16 %v430
    %v1514 = vunpack.c.h.b16 %v430
    %v1515 = vunpack.c.l.b16 %v431
    %v1516 = vunpack.c.h.b16 %v431
    %v1517 = vunpack.c.l.b16 %v432
    %v1518 = vunpack.c.h.b16 %v432
    %v1519 = vunpack.c.l.b16 %v433
    %v1520 = vunpack.c.h.b16 %v433
    %v1521 = vunpack.c.l.b16 %v434
    %v1522 = vunpack.c.h.b16 %v434
    %v1523 = vunpack.c.l.b16 %v435
    %v1524 = vunpack.c.h.b16 %v435
    %v1525 = vunpack.c.l.b16 %v436
    %v1526 = vunpack.c.h.b16 %v436
    %v1527 = vunpack.c.l.b16 %v437
    %v1528 = vunpack.c.h.b16 %v437
    %v1529 = vunpack.c.l.b16 %v438
    %v1530 = vunpack.c.h.b16 %v438
    %v1531 = vunpack.c.l.b16 %v439
    %v1532 = vunpack.c.h.b16 %v439
    %v1533 = vunpack.c.l.b16 %v440
    %v1534 = vunpack.c.h.b16 %v440
    %v1535 = vunpack.c.l.b16 %v441
    %v1536 = vunpack.c.h.b16 %v441
    %v1537 = vunpack.c.l.b16 %v442
    %v1538 = vunpack.c.h.b16 %v442
    %v1539 = vunpack.c.l.b16 %v443
    %v1540 = vunpack.c.h.b16 %v443
    %v1541 = vunpack.c.l.b16 %v444
    %v1542 = vunpack.c.h.b16 %v444
    %v1543 = vunpack.c.l.b16 %v445
    %v1544 = vunpack.c.h.b16 %v445
    %v1545 = vunpack.c.l.b16 %v446
    %v1546 = vunpack.c.h.b16 %v446
    %v1547 = vunpack.c.l.b16 %v447
    %v1548 = vunpack.c.h.b16 %v447
    %v1549 = vunpack.c.l.b16 %v448
    %v1550 = vunpack.c.h.b16 %v448
    %v1551 = vunpack.c.l.b16 %v449
    %v1552 = vunpack.c.h.b16 %v449
    %v1553 = vunpack.c.l.b16 %v450
    %v1554 = vunpack.c.h.b16 %v450
    %v1555 = vunpack.c.l.b16 %v451
    %v1556 = vunpack.c.h.b16 %v451
    %v1557 = vunpack.c.l.b16 %v452
    %v1558 = vunpack.c.h.b16 %v452
    %v1559 = vunpack.c.l.b16 %v453
    %v1560 = vunpack.c.h.b16 %v453
    %v1561 = vunpack.c.l.b16 %v454
    %v1562 = vunpack.c.h.b16 %v454
    %v1563 = vunpack.c.l.b16 %v455
    %v1564 = vunpack.c.h.b16 %v455
    %v1565 = vunpack.c.l.b16 %v456
    %v1566 = vunpack.c.h.b16 %v456
    %v1567 = vunpack.c.l.b16 %v457
    %v1568 = vunpack.c.h.b16 %v457
    %v1569 = vunpack.c.l.b16 %v458
    %v1570 = vunpack.c.h.b16 %v458
    %v1571 = vunpack.c.l.b16 %v459
    %v1572 = vunpack.c.h.b16 %v459
    %v1573 = vunpack.c.l.b16 %v460
    %v1574 = vunpack.c.h.b16 %v460
    %v1575 = vunpack.c.l.b16 %v461
    %v1576 = vunpack.c.h.b16 %v461
    %v1577 = vunpack.c.l.b16 %v462
    %v1578 = vunpack.c.h.b16 %v462
    %v1579 = vunpack.c.l.b16 %v463
    %v1580 = vunpack.c.h.b16 %v463
    %v1581 = vunpack.c.l.b16 %v464
    %v1582 = vunpack.c.h.b16 %v464
    %v1583 = vunpack.c.l.b16 %v465
    %v1584 = vunpack.c.h.b16 %v465
    %v1585 = vunpack.c.l.b16 %v466
    %v1586 = vunpack.c.h.b16 %v466
    %v1587 = vunpack.c.l.b16 %v467
    %v1588 = vunpack.c.h.b16 %v467
    %v1589 = vunpack.c.l.b16 %v468
    %v1590 = vunpack.c.h.b16 %v468
    %v1591 = vunpack.c.l.b16 %v469
    %v1592 = vunpack.c.h.b16 %v469
    %v1593 = vunpack.c.l.b16 %v470
    %v1594 = vunpack.c.h.b16 %v470
    %v1595 = vunpack.c.l.b16 %v471
    %v1596 = vunpack.c.h.b16 %v471
    %v1597 = vunpack.c.l.b16 %v472
    %v1598 = vunpack.c.h.b16 %v472
    %v1599 = vunpack.c.l.b16 %v473
    %v1600 = vunpack.c.h.b16 %v473
    %v1601 = vunpack.c.l.b16 %v474
    %v1602 = vunpack.c.h.b16 %v474
    %v1603 = vunpack.c.l.b16 %v475
    %v1604 = vunpack.c.h.b16 %v475
    %v1605 = vunpack.c.l.b16 %v476
    %v1606 = vunpack.c.h.b16 %v476
    %v1607 = vunpack.c.l.b16 %v477
    %v1608 = vunpack.c.h.b16 %v477
    %v1609 = vunpack.c.l.b16 %v478
    %v1610 = vunpack.c.h.b16 %v478
    %v1611 = vunpack.c.l.b16 %v479
    %v1612 = vunpack.c.h.b16 %v479
    %v1613 = vunpack.c.l.b16 %v480
    %v1614 = vunpack.c.h.b16 %v480
    %v1615 = vunpack.c.l.b16 %v481
    %v1616 = vunpack.c.h.b16 %v481
    %v1617 = vunpack.c.l.b16 %v482
    %v1618 = vunpack.c.h.b16 %v482
    %v1619 = vunpack.c.l.b16 %v483
    %v1620 = vunpack.c.h.b16 %v483
    %v1621 = vunpack.c.l.b16 %v484
    %v1622 = vunpack.c.h.b16 %v484
    %v1623 = vunpack.c.l.b16 %v485
    %v1624 = vunpack.c.h.b16 %v485
    %v1625 = vunpack.c.l.b16 %v486
    %v1626 = vunpack.c.h.b16 %v486
    %v1627 = vunpack.c.l.b16 %v487
    %v1628 = vunpack.c.h.b16 %v487
    %v1629 = vunpack.c.l.b16 %v488
    %v1630 = vunpack.c.h.b16 %v488
    %v1631 = vunpack.c.l.b16 %v489
    %v1632 = vunpack.c.h.b16 %v489
    %v1633 = vunpack.c.l.b16 %v490
    %v1634 = vunpack.c.h.b16 %v490
    %v1635 = vunpack.c.l.b16 %v491
    %v1636 = vunpack.c.h.b16 %v491
    %v1637 = vunpack.c.l.b16 %v492
    %v1638 = vunpack.c.h.b16 %v492
    %v1639 = vunpack.c.l.b16 %v493
    %v1640 = vunpack.c.h.b16 %v493
    %v1641 = vunpack.c.l.b16 %v494
    %v1642 = vunpack.c.h.b16 %v494
    %v1643 = vunpack.c.l.b16 %v495
    %v1644 = vunpack.c.h.b16 %v495
    %v1645 = vunpack.c.l.b16 %v496
    %v1646 = vunpack.c.h.b16 %v496
    %v1647 = vunpack.c.l.b16 %v497
    %v1648 = vunpack.c.h.b16 %v497
    %v1649 = vunpack.c.l.b16 %v498
    %v1650 = vunpack.c.h.b16 %v498
    %v1651 = vpack.c.b16 %v891, %v883
    %v1652 = vpack.c.b16 %v892, %v884
    %v1653 = vpack.c.b16 %v893, %v885
    %v1654 = vpack.c.b16 %v894, %v886
    %v1655 = vpack.c.b16 %v895, %v887
    %v1656 = vpack.c.b16 %v896, %v888
    %v1657 = vpack.c.b16 %v897, %v889
    %v1658 = vpack.c.b16 %v898, %v890
    %v1659 = vpack.c.b16 %v907, %v899
    %v1660 = vpack.c.b16 %v908, %v900
    %v1661 = vpack.c.b16 %v909, %v901
    %v1662 = vpack.c.b16 %v910, %v902
    %v1663 = vpack.c.b16 %v911, %v903
    %v1664 = vpack.c.b16 %v912, %v904
    %v1665 = vpack.c.b16 %v913, %v905
    %v1666 = vpack.c.b16 %v914, %v906
    %v1667 = vpack.c.b16 %v923, %v915
    %v1668 = vpack.c.b16 %v924, %v916
    %v1669 = vpack.c.b16 %v925, %v917
    %v1670 = vpack.c.b16 %v926, %v918
    %v1671 = vpack.c.b16 %v927, %v919
    %v1672 = vpack.c.b16 %v928, %v920
    %v1673 = vpack.c.b16 %v929, %v921
    %v1674 = vpack.c.b16 %v930, %v922
    %v1675 = vpack.c.b16 %v939, %v931
    %v1676 = vpack.c.b16 %v940, %v932
    %v1677 = vpack.c.b16 %v941, %v933
    %v1678 = vpack.c.b16 %v942, %v934
    %v1679 = vpack.c.b16 %v943, %v935
    %v1680 = vpack.c.b16 %v944, %v936
    %v1681 = vpack.c.b16 %v945, %v937
    %v1682 = vpack.c.b16 %v946, %v938
    %v1683 = vpack.c.b16 %v955, %v947
    %v1684 = vpack.c.b16 %v956, %v948
    %v1685 = vpack.c.b16 %v957, %v949
    %v1686 = vpack.c.b16 %v958, %v950
    %v1687 = vpack.c.b16 %v959, %v951
    %v1688 = vpack.c.b16 %v960, %v952
    %v1689 = vpack.c.b16 %v961, %v953
    %v1690 = vpack.c.b16 %v962, %v954
    %v1691 = vpack.c.b16 %v971, %v963
    %v1692 = vpack.c.b16 %v972, %v964
    %v1693 = vpack.c.b16 %v973, %v965
    %v1694 = vpack.c.b16 %v974, %v966
    %v1695 = vpack.c.b16 %v975, %v967
    %v1696 = vpack.c.b16 %v976, %v968
    %v1697 = vpack.c.b16 %v977, %v969
    %v1698 = vpack.c.b16 %v978, %v970
    %v1699 = vpack.c.b16 %v987, %v979
    %v1700 = vpack.c.b16 %v988, %v980
    %v1701 = vpack.c.b16 %v989, %v981
    %v1702 = vpack.c.b16 %v990, %v982
    %v1703 = vpack.c.b16 %v991, %v983
    %v1704 = vpack.c.b16 %v992, %v984
    %v1705 = vpack.c.b16 %v993, %v985
    %v1706 = vpack.c.b16 %v994, %v986
    %v1707 = vpack.c.b16 %v1003, %v995
    %v1708 = vpack.c.b16 %v1004, %v996
    %v1709 = vpack.c.b16 %v1005, %v997
    %v1710 = vpack.c.b16 %v1006, %v998
    %v1711 = vpack.c.b16 %v1007, %v999
    %v1712 = vpack.c.b16 %v1008, %v1000
    %v1713 = vpack.c.b16 %v1009, %v1001
    %v1714 = vpack.c.b16 %v1010, %v1002
    %v1715 = vpack.c.b16 %v1019, %v1011
    %v1716 = vpack.c.b16 %v1020, %v1012
    %v1717 = vpack.c.b16 %v1021, %v1013
    %v1718 = vpack.c.b16 %v1022, %v1014
    %v1719 = vpack.c.b16 %v1023, %v1015
    %v1720 = vpack.c.b16 %v1024, %v1016
    %v1721 = vpack.c.b16 %v1025, %v1017
    %v1722 = vpack.c.b16 %v1026, %v1018
    %v1723 = vpack.c.b16 %v1035, %v1027
    %v1724 = vpack.c.b16 %v1036, %v1028
    %v1725 = vpack.c.b16 %v1037, %v1029
    %v1726 = vpack.c.b16 %v1038, %v1030
    %v1727 = vpack.c.b16 %v1039, %v1031
    %v1728 = vpack.c.b16 %v1040, %v1032
    %v1729 = vpack.c.b16 %v1041, %v1033
    %v1730 = vpack.c.b16 %v1042, %v1034
    %v1731 = vpack.c.b16 %v1051, %v1043
    %v1732 = vpack.c.b16 %v1052, %v1044
    %v1733 = vpack.c.b16 %v1053, %v1045
    %v1734 = vpack.c.b16 %v1054, %v1046
    %v1735 = vpack.c.b16 %v1055, %v1047
    %v1736 = vpack.c.b16 %v1056, %v1048
    %v1737 = vpack.c.b16 %v1057, %v1049
    %v1738 = vpack.c.b16 %v1058, %v1050
    %v1739 = vpack.c.b16 %v1067, %v1059
    %v1740 = vpack.c.b16 %v1068, %v1060
    %v1741 = vpack.c.b16 %v1069, %v1061
    %v1742 = vpack.c.b16 %v1070, %v1062
    %v1743 = vpack.c.b16 %v1071, %v1063
    %v1744 = vpack.c.b16 %v1072, %v1064
    %v1745 = vpack.c.b16 %v1073, %v1065
    %v1746 = vpack.c.b16 %v1074, %v1066
    %v1747 = vpack.c.b16 %v1083, %v1075
    %v1748 = vpack.c.b16 %v1084, %v1076
    %v1749 = vpack.c.b16 %v1085, %v1077
    %v1750 = vpack.c.b16 %v1086, %v1078
    %v1751 = vpack.c.b16 %v1087, %v1079
    %v1752 = vpack.c.b16 %v1088, %v1080
    %v1753 = vpack.c.b16 %v1089, %v1081
    %v1754 = vpack.c.b16 %v1090, %v1082
    %v1755 = vpack.c.b16 %v1099, %v1091
    %v1756 = vpack.c.b16 %v1100, %v1092
    %v1757 = vpack.c.b16 %v1101, %v1093
    %v1758 = vpack.c.b16 %v1102, %v1094
    %v1759 = vpack.c.b16 %v1103, %v1095
    %v1760 = vpack.c.b16 %v1104, %v1096
    %v1761 = vpack.c.b16 %v1105, %v1097
    %v1762 = vpack.c.b16 %v1106, %v1098
    %v1763 = vpack.c.b16 %v1115, %v1107
    %v1764 = vpack.c.b16 %v1116, %v1108
    %v1765 = vpack.c.b16 %v1117, %v1109
    %v1766 = vpack.c.b16 %v1118, %v1110
    %v1767 = vpack.c.b16 %v1119, %v1111
    %v1768 = vpack.c.b16 %v1120, %v1112
    %v1769 = vpack.c.b16 %v1121, %v1113
    %v1770 = vpack.c.b16 %v1122, %v1114
    %v1771 = vpack.c.b16 %v1131, %v1123
    %v1772 = vpack.c.b16 %v1132, %v1124
    %v1773 = vpack.c.b16 %v1133, %v1125
    %v1774 = vpack.c.b16 %v1134, %v1126
    %v1775 = vpack.c.b16 %v1135, %v1127
    %v1776 = vpack.c.b16 %v1136, %v1128
    %v1777 = vpack.c.b16 %v1137, %v1129
    %v1778 = vpack.c.b16 %v1138, %v1130
    %v1779 = vpack.c.b16 %v1147, %v1139
    %v1780 = vpack.c.b16 %v1148, %v1140
    %v1781 = vpack.c.b16 %v1149, %v1141
    %v1782 = vpack.c.b16 %v1150, %v1142
    %v1783 = vpack.c.b16 %v1151, %v1143
    %v1784 = vpack.c.b16 %v1152, %v1144
    %v1785 = vpack.c.b16 %v1153, %v1145
    %v1786 = vpack.c.b16 %v1154, %v1146
    %v1787 = vpack.c.b16 %v1163, %v1155
    %v1788 = vpack.c.b16 %v1164, %v1156
    %v1789 = vpack.c.b16 %v1165, %v1157
    %v1790 = vpack.c.b16 %v1166, %v1158
    %v1791 = vpack.c.b16 %v1167, %v1159
    %v1792 = vpack.c.b16 %v1168, %v1160
    %v1793 = vpack.c.b16 %v1169, %v1161
    %v1794 = vpack.c.b16 %v1170, %v1162
    %v1795 = vpack.c.b16 %v1179, %v1171
    %v1796 = vpack.c.b16 %v1180, %v1172
    %v1797 = vpack.c.b16 %v1181, %v1173
    %v1798 = vpack.c.b16 %v1182, %v1174
    %v1799 = vpack.c.b16 %v1183, %v1175
    %v1800 = vpack.c.b16 %v1184, %v1176
    %v1801 = vpack.c.b16 %v1185, %v1177
    %v1802 = vpack.c.b16 %v1186, %v1178
    %v1803 = vpack.c.b16 %v1195, %v1187
    %v1804 = vpack.c.b16 %v1196, %v1188
    %v1805 = vpack.c.b16 %v1197, %v1189
    %v1806 = vpack.c.b16 %v1198, %v1190
    %v1807 = vpack.c.b16 %v1199, %v1191
    %v1808 = vpack.c.b16 %v1200, %v1192
    %v1809 = vpack.c.b16 %v1201, %v1193
    %v1810 = vpack.c.b16 %v1202, %v1194
    %v1811 = vpack.c.b16 %v1211, %v1203
    %v1812 = vpack.c.b16 %v1212, %v1204
    %v1813 = vpack.c.b16 %v1213, %v1205
    %v1814 = vpack.c.b16 %v1214, %v1206
    %v1815 = vpack.c.b16 %v1215, %v1207
    %v1816 = vpack.c.b16 %v1216, %v1208
    %v1817 = vpack.c.b16 %v1217, %v1209
    %v1818 = vpack.c.b16 %v1218, %v1210
    %v1819 = vpack.c.b16 %v1227, %v1219
    %v1820 = vpack.c.b16 %v1228, %v1220
    %v1821 = vpack.c.b16 %v1229, %v1221
    %v1822 = vpack.c.b16 %v1230, %v1222
    %v1823 = vpack.c.b16 %v1231, %v1223
    %v1824 = vpack.c.b16 %v1232, %v1224
    %v1825 = vpack.c.b16 %v1233, %v1225
    %v1826 = vpack.c.b16 %v1234, %v1226
    %v1827 = vpack.c.b16 %v1243, %v1235
    %v1828 = vpack.c.b16 %v1244, %v1236
    %v1829 = vpack.c.b16 %v1245, %v1237
    %v1830 = vpack.c.b16 %v1246, %v1238
    %v1831 = vpack.c.b16 %v1247, %v1239
    %v1832 = vpack.c.b16 %v1248, %v1240
    %v1833 = vpack.c.b16 %v1249, %v1241
    %v1834 = vpack.c.b16 %v1250, %v1242
    %v1835 = vpack.c.b16 %v1259, %v1251
    %v1836 = vpack.c.b16 %v1260, %v1252
    %v1837 = vpack.c.b16 %v1261, %v1253
    %v1838 = vpack.c.b16 %v1262, %v1254
    %v1839 = vpack.c.b16 %v1263, %v1255
    %v1840 = vpack.c.b16 %v1264, %v1256
    %v1841 = vpack.c.b16 %v1265, %v1257
    %v1842 = vpack.c.b16 %v1266, %v1258
    %v1843 = vpack.c.b16 %v1275, %v1267
    %v1844 = vpack.c.b16 %v1276, %v1268
    %v1845 = vpack.c.b16 %v1277, %v1269
    %v1846 = vpack.c.b16 %v1278, %v1270
    %v1847 = vpack.c.b16 %v1279, %v1271
    %v1848 = vpack.c.b16 %v1280, %v1272
    %v1849 = vpack.c.b16 %v1281, %v1273
    %v1850 = vpack.c.b16 %v1282, %v1274
    %v1851 = vpack.c.b16 %v1291, %v1283
    %v1852 = vpack.c.b16 %v1292, %v1284
    %v1853 = vpack.c.b16 %v1293, %v1285
    %v1854 = vpack.c.b16 %v1294, %v1286
    %v1855 = vpack.c.b16 %v1295, %v1287
    %v1856 = vpack.c.b16 %v1296, %v1288
    %v1857 = vpack.c.b16 %v1297, %v1289
    %v1858 = vpack.c.b16 %v1298, %v1290
    %v1859 = vpack.c.b16 %v1307, %v1299
    %v1860 = vpack.c.b16 %v1308, %v1300
    %v1861 = vpack.c.b16 %v1309, %v1301
    %v1862 = vpack.c.b16 %v1310, %v1302
    %v1863 = vpack.c.b16 %v1311, %v1303
    %v1864 = vpack.c.b16 %v1312, %v1304
    %v1865 = vpack.c.b16 %v1313, %v1305
    %v1866 = vpack.c.b16 %v1314, %v1306
    %v1867 = vpack.c.b16 %v1323, %v1315
    %v1868 = vpack.c.b16 %v1324, %v1316
    %v1869 = vpack.c.b16 %v1325, %v1317
    %v1870 = vpack.c.b16 %v1326, %v1318
    %v1871 = vpack.c.b16 %v1327, %v1319
    %v1872 = vpack.c.b16 %v1328, %v1320
    %v1873 = vpack.c.b16 %v1329, %v1321
    %v1874 = vpack.c.b16 %v1330, %v1322
    %v1875 = vpack.c.b16 %v1339, %v1331
    %v1876 = vpack.c.b16 %v1340, %v1332
    %v1877 = vpack.c.b16 %v1341, %v1333
    %v1878 = vpack.c.b16 %v1342, %v1334
    %v1879 = vpack.c.b16 %v1343, %v1335
    %v1880 = vpack.c.b16 %v1344, %v1336
    %v1881 = vpack.c.b16 %v1345, %v1337
    %v1882 = vpack.c.b16 %v1346, %v1338
    %v1883 = vpack.c.b16 %v1355, %v1347
    %v1884 = vpack.c.b16 %v1356, %v1348
    %v1885 = vpack.c.b16 %v1357, %v1349
    %v1886 = vpack.c.b16 %v1358, %v1350
    %v1887 = vpack.c.b16 %v1359, %v1351
    %v1888 = vpack.c.b16 %v1360, %v1352
    %v1889 = vpack.c.b16 %v1361, %v1353
    %v1890 = vpack.c.b16 %v1362, %v1354
    %v1891 = vpack.c.b16 %v1371, %v1363
    %v1892 = vpack.c.b16 %v1372, %v1364
    %v1893 = vpack.c.b16 %v1373, %v1365
    %v1894 = vpack.c.b16 %v1374, %v1366
    %v1895 = vpack.c.b16 %v1375, %v1367
    %v1896 = vpack.c.b16 %v1376, %v1368
    %v1897 = vpack.c.b16 %v1377, %v1369
    %v1898 = vpack.c.b16 %v1378, %v1370
    %v1899 = vpack.c.b16 %v1387, %v1379
    %v1900 = vpack.c.b16 %v1388, %v1380
    %v1901 = vpack.c.b16 %v1389, %v1381
    %v1902 = vpack.c.b16 %v1390, %v1382
    %v1903 = vpack.c.b16 %v1391, %v1383
    %v1904 = vpack.c.b16 %v1392, %v1384
    %v1905 = vpack.c.b16 %v1393, %v1385
    %v1906 = vpack.c.b16 %v1394, %v1386
    %v1907 = vpack.c.b16 %v1403, %v1395
    %v1908 = vpack.c.b16 %v1404, %v1396
    %v1909 = vpack.c.b16 %v1405, %v1397
    %v1910 = vpack.c.b16 %v1406, %v1398
    %v1911 = vpack.c.b16 %v1407, %v1399
    %v1912 = vpack.c.b16 %v1408, %v1400
    %v1913 = vpack.c.b16 %v1409, %v1401
    %v1914 = vpack.c.b16 %v1410, %v1402
    %v1915 = vpack.c.b16 %v1419, %v1411
    %v1916 = vpack.c.b16 %v1420, %v1412
    %v1917 = vpack.c.b16 %v1421, %v1413
    %v1918 = vpack.c.b16 %v1422, %v1414
    %v1919 = vpack.c.b16 %v1423, %v1415
    %v1920 = vpack.c.b16 %v1424, %v1416
    %v1921 = vpack.c.b16 %v1425, %v1417
    %v1922 = vpack.c.b16 %v1426, %v1418
    %v1923 = vpack.c.b16 %v1435, %v1427
    %v1924 = vpack.c.b16 %v1436, %v1428
    %v1925 = vpack.c.b16 %v1437, %v1429
    %v1926 = vpack.c.b16 %v1438, %v1430
    %v1927 = vpack.c.b16 %v1439, %v1431
    %v1928 = vpack.c.b16 %v1440, %v1432
    %v1929 = vpack.c.b16 %v1441, %v1433
    %v1930 = vpack.c.b16 %v1442, %v1434
    %v1931 = vpack.c.b16 %v1451, %v1443
    %v1932 = vpack.c.b16 %v1452, %v1444
    %v1933 = vpack.c.b16 %v1453, %v1445
    %v1934 = vpack.c.b16 %v1454, %v1446
    %v1935 = vpack.c.b16 %v1455, %v1447
    %v1936 = vpack.c.b16 %v1456, %v1448
    %v1937 = vpack.c.b16 %v1457, %v1449
    %v1938 = vpack.c.b16 %v1458, %v1450
    %v1939 = vpack.c.b16 %v1467, %v1459
    %v1940 = vpack.c.b16 %v1468, %v1460
    %v1941 = vpack.c.b16 %v1469, %v1461
    %v1942 = vpack.c.b16 %v1470, %v1462
    %v1943 = vpack.c.b16 %v1471, %v1463
    %v1944 = vpack.c.b16 %v1472, %v1464
    %v1945 = vpack.c.b16 %v1473, %v1465
    %v1946 = vpack.c.b16 %v1474, %v1466
    %v1947 = vpack.c.b16 %v1483, %v1475
    %v1948 = vpack.c.b16 %v1484, %v1476
    %v1949 = vpack.c.b16 %v1485, %v1477
    %v1950 = vpack.c.b16 %v1486, %v1478
    %v1951 = vpack.c.b16 %v1487, %v1479
    %v1952 = vpack.c.b16 %v1488, %v1480
    %v1953 = vpack.c.b16 %v1489, %v1481
    %v1954 = vpack.c.b16 %v1490, %v1482
    %v1955 = vpack.c.b16 %v1499, %v1491
    %v1956 = vpack.c.b16 %v1500, %v1492
    %v1957 = vpack.c.b16 %v1501, %v1493
    %v1958 = vpack.c.b16 %v1502, %v1494
    %v1959 = vpack.c.b16 %v1503, %v1495
    %v1960 = vpack.c.b16 %v1504, %v1496
    %v1961 = vpack.c.b16 %v1505, %v1497
    %v1962 = vpack.c.b16 %v1506, %v1498
    %v1963 = vpack.c.b16 %v1515, %v1507
    %v1964 = vpack.c.b16 %v1516, %v1508
    %v1965 = vpack.c.b16 %v1517, %v1509
    %v1966 = vpack.c.b16 %v1518, %v1510
    %v1967 = vpack.c.b16 %v1519, %v1511
    %v1968 = vpack.c.b16 %v1520, %v1512
    %v1969 = vpack.c.b16 %v1521, %v1513
    %v1970 = vpack.c.b16 %v1522, %v1514
    %v1971 = vpack.c.b16 %v1531, %v1523
    %v1972 = vpack.c.b16 %v1532, %v1524
    %v1973 = vpack.c.b16 %v1533, %v1525
    %v1974 = vpack.c.b16 %v1534, %v1526
    %v1975 = vpack.c.b16 %v1535, %v1527
    %v1976 = vpack.c.b16 %v1536, %v1528
    %v1977 = vpack.c.b16 %v1537, %v1529
    %v1978 = vpack.c.b16 %v1538, %v1530
    %v1979 = vpack.c.b16 %v1547, %v1539
    %v1980 = vpack.c.b16 %v1548, %v1540
    %v1981 = vpack.c.b16 %v1549, %v1541
    %v1982 = vpack.c.b16 %v1550, %v1542
    %v1983 = vpack.c.b16 %v1551, %v1543
    %v1984 = vpack.c.b16 %v1552, %v1544
    %v1985 = vpack.c.b16 %v1553, %v1545
    %v1986 = vpack.c.b16 %v1554, %v1546
    %v1987 = vpack.c.b16 %v1563, %v1555
    %v1988 = vpack.c.b16 %v1564, %v1556
    %v1989 = vpack.c.b16 %v1565, %v1557
    %v1990 = vpack.c.b16 %v1566, %v1558
    %v1991 = vpack.c.b16 %v1567, %v1559
    %v1992 = vpack.c.b16 %v1568, %v1560
    %v1993 = vpack.c.b16 %v1569, %v1561
    %v1994 = vpack.c.b16 %v1570, %v1562
    %v1995 = vpack.c.b16 %v1579, %v1571
    %v1996 = vpack.c.b16 %v1580, %v1572
    %v1997 = vpack.c.b16 %v1581, %v1573
    %v1998 = vpack.c.b16 %v1582, %v1574
    %v1999 = vpack.c.b16 %v1583, %v1575
    %v2000 = vpack.c.b16 %v1584, %v1576
    %v2001 = vpack.c.b16 %v1585, %v1577
    %v2002 = vpack.c.b16 %v1586, %v1578
    %v2003 = vpack.c.b16 %v1595, %v1587
    %v2004 = vpack.c.b16 %v1596, %v1588
    %v2005 = vpack.c.b16 %v1597, %v1589
    %v2006 = vpack.c.b16 %v1598, %v1590
    %v2007 = vpack.c.b16 %v1599, %v1591
    %v2008 = vpack.c.b16 %v1600, %v1592
    %v2009 = vpack.c.b16 %v1601, %v1593
    %v2010 = vpack.c.b16 %v1602, %v1594
    %v2011 = vpack.c.b16 %v1611, %v1603
    %v2012 = vpack.c.b16 %v1612, %v1604
    %v2013 = vpack.c.b16 %v1613, %v1605
    %v2014 = vpack.c.b16 %v1614, %v1606
    %v2015 = vpack.c.b16 %v1615, %v1607
    %v2016 = vpack.c.b16 %v1616, %v1608
    %v2017 = vpack.c.b16 %v1617, %v1609
    %v2018 = vpack.c.b16 %v1618, %v1610
    %v2019 = vpack.c.b16 %v1627, %v1619
    %v2020 = vpack.c.b16 %v1628, %v1620
    %v2021 = vpack.c.b16 %v1629, %v1621
    %v2022 = vpack.c.b16 %v1630, %v1622
    %v2023 = vpack.c.b16 %v1631, %v1623
    %v2024 = vpack.c.b16 %v1632, %v1624
    %v2025 = vpack.c.b16 %v1633, %v1625
    %v2026 = vpack.c.b16 %v1634, %v1626
    %v2027 = vpack.c.b16 %v1643, %v1635
    %v2028 = vpack.c.b16 %v1644, %v1636
    %v2029 = vpack.c.b16 %v1645, %v1637
    %v2030 = vpack.c.b16 %v1646, %v1638
    %v2031 = vpack.c.b16 %v1647, %v1639
    %v2032 = vpack.c.b16 %v1648, %v1640
    %v2033 = vpack.c.b16 %v1649, %v1641
    %v2034 = vpack.c.b16 %v1650, %v1642
    %2419 = vmatprep.subr.bf16.mxu0 %v1652
    %2420 = vmatpush1.bf16.msra.mxu0 %v1651
    %2421 = vmatprep.subr.bf16.mxu0 %v1660
    %2422 = vmatpush1.bf16.msra.mxu0 %v1659
    %2423 = vmatprep.subr.bf16.mxu0 %v1668
    %2424 = vmatpush1.bf16.msra.mxu0 %v1667
    %2425 = vmatprep.subr.bf16.mxu0 %v1676
    %2426 = vmatpush1.bf16.msra.mxu0 %v1675
    %2427 = vmatprep.subr.bf16.mxu0 %v1684
    %2428 = vmatpush1.bf16.msra.mxu0 %v1683
    %2429 = vmatprep.subr.bf16.mxu0 %v1692
    %2430 = vmatpush1.bf16.msra.mxu0 %v1691
    %2431 = vmatprep.subr.bf16.mxu0 %v1700
    %2432 = vmatpush1.bf16.msra.mxu0 %v1699
    %2433 = vmatprep.subr.bf16.mxu0 %v1708
    %2434 = vmatpush1.bf16.msra.mxu0 %v1707
    %2435 = vmatprep.subr.bf16.mxu0 %v1716
    %2436 = vmatpush1.bf16.msra.mxu0 %v1715
    %2437 = vmatprep.subr.bf16.mxu0 %v1724
    %2438 = vmatpush1.bf16.msra.mxu0 %v1723
    %2439 = vmatprep.subr.bf16.mxu0 %v1732
    %2440 = vmatpush1.bf16.msra.mxu0 %v1731
    %2441 = vmatprep.subr.bf16.mxu0 %v1740
    %2442 = vmatpush1.bf16.msra.mxu0 %v1739
    %2443 = vmatprep.subr.bf16.mxu0 %v1748
    %2444 = vmatpush1.bf16.msra.mxu0 %v1747
    %2445 = vmatprep.subr.bf16.mxu0 %v1756
    %2446 = vmatpush1.bf16.msra.mxu0 %v1755
    %2447 = vmatprep.subr.bf16.mxu0 %v1764
    %2448 = vmatpush1.bf16.msra.mxu0 %v1763
    %2449 = vmatprep.subr.bf16.mxu0 %v1772
    %2450 = vmatpush1.bf16.msra.mxu0 %v1771
    %2451 = vmatprep.mubr.bf16.mxu0 %v110
    %2452 = vmatmul.mubr.bf16.gmra.mrb[0].mxu0 %v109
    %v2453 = vpop.f32.mrb[0].mxu0
    %v2454 = vadd.f32 0.0, %v2453
    %v2455 = vpop.f32.mrb[0].mxu0
    %v2456 = vadd.f32 0.0, %v2455
    %v2457 = vpop.f32.mrb[0].mxu0
    %v2458 = vpop.f32.mrb[0].mxu0
    %2459 = vdwg.mxu0
    %2460 = vmatprep.subr.bf16.mxu0 %v1780
    %2461 = vmatpush1.bf16.msra.mxu0 %v1779
    %2462 = vmatprep.subr.bf16.mxu0 %v1788
    %2463 = vmatpush1.bf16.msra.mxu0 %v1787
    %2464 = vmatprep.subr.bf16.mxu0 %v1796
    %2465 = vmatpush1.bf16.msra.mxu0 %v1795
    %2466 = vmatprep.subr.bf16.mxu0 %v1804
    %2467 = vmatpush1.bf16.msra.mxu0 %v1803
    %2468 = vmatprep.subr.bf16.mxu0 %v1812
    %2469 = vmatpush1.bf16.msra.mxu0 %v1811
    %2470 = vmatprep.subr.bf16.mxu0 %v1820
    %2471 = vmatpush1.bf16.msra.mxu0 %v1819
    %2472 = vmatprep.subr.bf16.mxu0 %v1828
    %2473 = vmatpush1.bf16.msra.mxu0 %v1827
    %2474 = vmatprep.subr.bf16.mxu0 %v1836
    %2475 = vmatpush1.bf16.msra.mxu0 %v1835
    %2476 = vmatprep.subr.bf16.mxu0 %v1844
    %2477 = vmatpush1.bf16.msra.mxu0 %v1843
    %2478 = vmatprep.subr.bf16.mxu0 %v1852
    %2479 = vmatpush1.bf16.msra.mxu0 %v1851
    %2480 = vmatprep.subr.bf16.mxu0 %v1860
    %2481 = vmatpush1.bf16.msra.mxu0 %v1859
    %2482 = vmatprep.subr.bf16.mxu0 %v1868
    %2483 = vmatpush1.bf16.msra.mxu0 %v1867
    %2484 = vmatprep.subr.bf16.mxu0 %v1876
    %2485 = vmatpush1.bf16.msra.mxu0 %v1875
    %2486 = vmatprep.subr.bf16.mxu0 %v1884
    %2487 = vmatpush1.bf16.msra.mxu0 %v1883
    %2488 = vmatprep.subr.bf16.mxu0 %v1892
    %2489 = vmatpush1.bf16.msra.mxu0 %v1891
    %2490 = vmatprep.subr.bf16.mxu0 %v1900
    %2491 = vmatpush1.bf16.msra.mxu0 %v1899
    %2492 = vmatprep.mubr.bf16.mxu0 %v112
    %2493 = vmatmul.mubr.bf16.gmra.mrb[0].mxu0 %v111
    %v2494 = vpop.f32.mrb[0].mxu0
    %v2495 = vadd.f32 %v2454, %v2494
    %v2496 = vpop.f32.mrb[0].mxu0
    %v2497 = vadd.f32 %v2456, %v2496
    %v2498 = vpop.f32.mrb[0].mxu0
    %v2499 = vpop.f32.mrb[0].mxu0
    %2500 = vdwg.mxu0
    %2501 = vmatprep.subr.bf16.mxu0 %v1908
    %2502 = vmatpush1.bf16.msra.mxu0 %v1907
    %2503 = vmatprep.subr.bf16.mxu0 %v1916
    %2504 = vmatpush1.bf16.msra.mxu0 %v1915
    %2505 = vmatprep.subr.bf16.mxu0 %v1924
    %2506 = vmatpush1.bf16.msra.mxu0 %v1923
    %2507 = vmatprep.subr.bf16.mxu0 %v1932
    %2508 = vmatpush1.bf16.msra.mxu0 %v1931
    %2509 = vmatprep.subr.bf16.mxu0 %v1940
    %2510 = vmatpush1.bf16.msra.mxu0 %v1939
    %2511 = vmatprep.subr.bf16.mxu0 %v1948
    %2512 = vmatpush1.bf16.msra.mxu0 %v1947
    %2513 = vmatprep.subr.bf16.mxu0 %v1956
    %2514 = vmatpush1.bf16.msra.mxu0 %v1955
    %2515 = vmatprep.subr.bf16.mxu0 %v1964
    %2516 = vmatpush1.bf16.msra.mxu0 %v1963
    %2517 = vmatprep.subr.bf16.mxu0 %v1972
    %2518 = vmatpush1.bf16.msra.mxu0 %v1971
    %2519 = vmatprep.subr.bf16.mxu0 %v1980
    %2520 = vmatpush1.bf16.msra.mxu0 %v1979
    %2521 = vmatprep.subr.bf16.mxu0 %v1988
    %2522 = vmatpush1.bf16.msra.mxu0 %v1987
    %2523 = vmatprep.subr.bf16.mxu0 %v1996
    %2524 = vmatpush1.bf16.msra.mxu0 %v1995
    %2525 = vmatprep.subr.bf16.mxu0 %v2004
    %2526 = vmatpush1.bf16.msra.mxu0 %v2003
    %2527 = vmatprep.subr.bf16.mxu0 %v2012
    %2528 = vmatpush1.bf16.msra.mxu0 %v2011
    %2529 = vmatprep.subr.bf16.mxu0 %v2020
    %2530 = vmatpush1.bf16.msra.mxu0 %v2019
    %2531 = vmatprep.subr.bf16.mxu0 %v2028
    %2532 = vmatpush1.bf16.msra.mxu0 %v2027
    %2533 = vmatprep.mubr.bf16.mxu0 %v114
    %2534 = vmatmul.mubr.bf16.gmra.mrb[0].mxu0 %v113
    %v2535 = vpop.f32.mrb[0].mxu0
    %v2536 = vadd.f32 %v2495, %v2535
    %v2537 = vpop.f32.mrb[0].mxu0
    %v2538 = vadd.f32 %v2497, %v2537
    %v2539 = vpop.f32.mrb[0].mxu0
    %v2540 = vpop.f32.mrb[0].mxu0
    %2541 = vdwg.mxu0
    %2542 = vmatprep.subr.bf16.mxu0 %v1654
    %2543 = vmatpush1.bf16.msra.mxu0 %v1653
    %2544 = vmatprep.subr.bf16.mxu0 %v1662
    %2545 = vmatpush1.bf16.msra.mxu0 %v1661
    %2546 = vmatprep.subr.bf16.mxu0 %v1670
    %2547 = vmatpush1.bf16.msra.mxu0 %v1669
    %2548 = vmatprep.subr.bf16.mxu0 %v1678
    %2549 = vmatpush1.bf16.msra.mxu0 %v1677
    %2550 = vmatprep.subr.bf16.mxu0 %v1686
    %2551 = vmatpush1.bf16.msra.mxu0 %v1685
    %2552 = vmatprep.subr.bf16.mxu0 %v1694
    %2553 = vmatpush1.bf16.msra.mxu0 %v1693
    %2554 = vmatprep.subr.bf16.mxu0 %v1702
    %2555 = vmatpush1.bf16.msra.mxu0 %v1701
    %2556 = vmatprep.subr.bf16.mxu0 %v1710
    %2557 = vmatpush1.bf16.msra.mxu0 %v1709
    %2558 = vmatprep.subr.bf16.mxu0 %v1718
    %2559 = vmatpush1.bf16.msra.mxu0 %v1717
    %2560 = vmatprep.subr.bf16.mxu0 %v1726
    %2561 = vmatpush1.bf16.msra.mxu0 %v1725
    %2562 = vmatprep.subr.bf16.mxu0 %v1734
    %2563 = vmatpush1.bf16.msra.mxu0 %v1733
    %2564 = vmatprep.subr.bf16.mxu0 %v1742
    %2565 = vmatpush1.bf16.msra.mxu0 %v1741
    %2566 = vmatprep.subr.bf16.mxu0 %v1750
    %2567 = vmatpush1.bf16.msra.mxu0 %v1749
    %2568 = vmatprep.subr.bf16.mxu0 %v1758
    %2569 = vmatpush1.bf16.msra.mxu0 %v1757
    %2570 = vmatprep.subr.bf16.mxu0 %v1766
    %2571 = vmatpush1.bf16.msra.mxu0 %v1765
    %2572 = vmatprep.subr.bf16.mxu0 %v1774
    %2573 = vmatpush1.bf16.msra.mxu0 %v1773
    %2574 = vmatprep.mubr.bf16.mxu0 %v110
    %2575 = vmatmul.mubr.bf16.gmra.mrb[0].mxu0 %v109
    %v2576 = vpop.f32.mrb[0].mxu0
    %v2577 = vadd.f32 0.0, %v2576
    %v2578 = vpop.f32.mrb[0].mxu0
    %v2579 = vadd.f32 0.0, %v2578
    %v2580 = vpop.f32.mrb[0].mxu0
    %v2581 = vpop.f32.mrb[0].mxu0
    %2582 = vdwg.mxu0
    %2583 = vmatprep.subr.bf16.mxu0 %v1782
    %2584 = vmatpush1.bf16.msra.mxu0 %v1781
    %2585 = vmatprep.subr.bf16.mxu0 %v1790
    %2586 = vmatpush1.bf16.msra.mxu0 %v1789
    %2587 = vmatprep.subr.bf16.mxu0 %v1798
    %2588 = vmatpush1.bf16.msra.mxu0 %v1797
    %2589 = vmatprep.subr.bf16.mxu0 %v1806
    %2590 = vmatpush1.bf16.msra.mxu0 %v1805
    %2591 = vmatprep.subr.bf16.mxu0 %v1814
    %2592 = vmatpush1.bf16.msra.mxu0 %v1813
    %2593 = vmatprep.subr.bf16.mxu0 %v1822
    %2594 = vmatpush1.bf16.msra.mxu0 %v1821
    %2595 = vmatprep.subr.bf16.mxu0 %v1830
    %2596 = vmatpush1.bf16.msra.mxu0 %v1829
    %2597 = vmatprep.subr.bf16.mxu0 %v1838
    %2598 = vmatpush1.bf16.msra.mxu0 %v1837
    %2599 = vmatprep.subr.bf16.mxu0 %v1846
    %2600 = vmatpush1.bf16.msra.mxu0 %v1845
    %2601 = vmatprep.subr.bf16.mxu0 %v1854
    %2602 = vmatpush1.bf16.msra.mxu0 %v1853
    %2603 = vmatprep.subr.bf16.mxu0 %v1862
    %2604 = vmatpush1.bf16.msra.mxu0 %v1861
    %2605 = vmatprep.subr.bf16.mxu0 %v1870
    %2606 = vmatpush1.bf16.msra.mxu0 %v1869
    %2607 = vmatprep.subr.bf16.mxu0 %v1878
    %2608 = vmatpush1.bf16.msra.mxu0 %v1877
    %2609 = vmatprep.subr.bf16.mxu0 %v1886
    %2610 = vmatpush1.bf16.msra.mxu0 %v1885
    %2611 = vmatprep.subr.bf16.mxu0 %v1894
    %2612 = vmatpush1.bf16.msra.mxu0 %v1893
    %2613 = vmatprep.subr.bf16.mxu0 %v1902
    %2614 = vmatpush1.bf16.msra.mxu0 %v1901
    %2615 = vmatprep.mubr.bf16.mxu0 %v112
    %2616 = vmatmul.mubr.bf16.gmra.mrb[0].mxu0 %v111
    %v2617 = vpop.f32.mrb[0].mxu0
    %v2618 = vadd.f32 %v2577, %v2617
    %v2619 = vpop.f32.mrb[0].mxu0
    %v2620 = vadd.f32 %v2579, %v2619
    %v2621 = vpop.f32.mrb[0].mxu0
    %v2622 = vpop.f32.mrb[0].mxu0
    %2623 = vdwg.mxu0
    %2624 = vmatprep.subr.bf16.mxu0 %v1910
    %2625 = vmatpush1.bf16.msra.mxu0 %v1909
    %2626 = vmatprep.subr.bf16.mxu0 %v1918
    %2627 = vmatpush1.bf16.msra.mxu0 %v1917
    %2628 = vmatprep.subr.bf16.mxu0 %v1926
    %2629 = vmatpush1.bf16.msra.mxu0 %v1925
    %2630 = vmatprep.subr.bf16.mxu0 %v1934
    %2631 = vmatpush1.bf16.msra.mxu0 %v1933
    %2632 = vmatprep.subr.bf16.mxu0 %v1942
    %2633 = vmatpush1.bf16.msra.mxu0 %v1941
    %2634 = vmatprep.subr.bf16.mxu0 %v1950
    %2635 = vmatpush1.bf16.msra.mxu0 %v1949
    %2636 = vmatprep.subr.bf16.mxu0 %v1958
    %2637 = vmatpush1.bf16.msra.mxu0 %v1957
    %2638 = vmatprep.subr.bf16.mxu0 %v1966
    %2639 = vmatpush1.bf16.msra.mxu0 %v1965
    %2640 = vmatprep.subr.bf16.mxu0 %v1974
    %2641 = vmatpush1.bf16.msra.mxu0 %v1973
    %2642 = vmatprep.subr.bf16.mxu0 %v1982
    %2643 = vmatpush1.bf16.msra.mxu0 %v1981
    %2644 = vmatprep.subr.bf16.mxu0 %v1990
    %2645 = vmatpush1.bf16.msra.mxu0 %v1989
    %2646 = vmatprep.subr.bf16.mxu0 %v1998
    %2647 = vmatpush1.bf16.msra.mxu0 %v1997
    %2648 = vmatprep.subr.bf16.mxu0 %v2006
    %2649 = vmatpush1.bf16.msra.mxu0 %v2005
    %2650 = vmatprep.subr.bf16.mxu0 %v2014
    %2651 = vmatpush1.bf16.msra.mxu0 %v2013
    %2652 = vmatprep.subr.bf16.mxu0 %v2022
    %2653 = vmatpush1.bf16.msra.mxu0 %v2021
    %2654 = vmatprep.subr.bf16.mxu0 %v2030
    %2655 = vmatpush1.bf16.msra.mxu0 %v2029
    %2656 = vmatprep.mubr.bf16.mxu0 %v114
    %2657 = vmatmul.mubr.bf16.gmra.mrb[0].mxu0 %v113
    %v2658 = vpop.f32.mrb[0].mxu0
    %v2659 = vadd.f32 %v2618, %v2658
    %v2660 = vpop.f32.mrb[0].mxu0
    %v2661 = vadd.f32 %v2620, %v2660
    %v2662 = vpop.f32.mrb[0].mxu0
    %v2663 = vpop.f32.mrb[0].mxu0
    %2664 = vdwg.mxu0
    %2665 = vmatprep.subr.bf16.mxu0 %v1656
    %2666 = vmatpush1.bf16.msra.mxu0 %v1655
    %2667 = vmatprep.subr.bf16.mxu0 %v1664
    %2668 = vmatpush1.bf16.msra.mxu0 %v1663
    %2669 = vmatprep.subr.bf16.mxu0 %v1672
    %2670 = vmatpush1.bf16.msra.mxu0 %v1671
    %2671 = vmatprep.subr.bf16.mxu0 %v1680
    %2672 = vmatpush1.bf16.msra.mxu0 %v1679
    %2673 = vmatprep.subr.bf16.mxu0 %v1688
    %2674 = vmatpush1.bf16.msra.mxu0 %v1687
    %2675 = vmatprep.subr.bf16.mxu0 %v1696
    %2676 = vmatpush1.bf16.msra.mxu0 %v1695
    %2677 = vmatprep.subr.bf16.mxu0 %v1704
    %2678 = vmatpush1.bf16.msra.mxu0 %v1703
    %2679 = vmatprep.subr.bf16.mxu0 %v1712
    %2680 = vmatpush1.bf16.msra.mxu0 %v1711
    %2681 = vmatprep.subr.bf16.mxu0 %v1720
    %2682 = vmatpush1.bf16.msra.mxu0 %v1719
    %2683 = vmatprep.subr.bf16.mxu0 %v1728
    %2684 = vmatpush1.bf16.msra.mxu0 %v1727
    %2685 = vmatprep.subr.bf16.mxu0 %v1736
    %2686 = vmatpush1.bf16.msra.mxu0 %v1735
    %2687 = vmatprep.subr.bf16.mxu0 %v1744
    %2688 = vmatpush1.bf16.msra.mxu0 %v1743
    %2689 = vmatprep.subr.bf16.mxu0 %v1752
    %2690 = vmatpush1.bf16.msra.mxu0 %v1751
    %2691 = vmatprep.subr.bf16.mxu0 %v1760
    %2692 = vmatpush1.bf16.msra.mxu0 %v1759
    %2693 = vmatprep.subr.bf16.mxu0 %v1768
    %2694 = vmatpush1.bf16.msra.mxu0 %v1767
    %2695 = vmatprep.subr.bf16.mxu0 %v1776
    %2696 = vmatpush1.bf16.msra.mxu0 %v1775
    %2697 = vmatprep.mubr.bf16.mxu0 %v110
    %2698 = vmatmul.mubr.bf16.gmra.mrb[0].mxu0 %v109
    %v2699 = vpop.f32.mrb[0].mxu0
    %v2700 = vadd.f32 0.0, %v2699
    %v2701 = vpop.f32.mrb[0].mxu0
    %v2702 = vadd.f32 0.0, %v2701
    %v2703 = vpop.f32.mrb[0].mxu0
    %v2704 = vpop.f32.mrb[0].mxu0
    %2705 = vdwg.mxu0
    %2706 = vmatprep.subr.bf16.mxu0 %v1784
    %2707 = vmatpush1.bf16.msra.mxu0 %v1783
    %2708 = vmatprep.subr.bf16.mxu0 %v1792
    %2709 = vmatpush1.bf16.msra.mxu0 %v1791
    %2710 = vmatprep.subr.bf16.mxu0 %v1800
    %2711 = vmatpush1.bf16.msra.mxu0 %v1799
    %2712 = vmatprep.subr.bf16.mxu0 %v1808
    %2713 = vmatpush1.bf16.msra.mxu0 %v1807
    %2714 = vmatprep.subr.bf16.mxu0 %v1816
    %2715 = vmatpush1.bf16.msra.mxu0 %v1815
    %2716 = vmatprep.subr.bf16.mxu0 %v1824
    %2717 = vmatpush1.bf16.msra.mxu0 %v1823
    %2718 = vmatprep.subr.bf16.mxu0 %v1832
    %2719 = vmatpush1.bf16.msra.mxu0 %v1831
    %2720 = vmatprep.subr.bf16.mxu0 %v1840
    %2721 = vmatpush1.bf16.msra.mxu0 %v1839
    %2722 = vmatprep.subr.bf16.mxu0 %v1848
    %2723 = vmatpush1.bf16.msra.mxu0 %v1847
    %2724 = vmatprep.subr.bf16.mxu0 %v1856
    %2725 = vmatpush1.bf16.msra.mxu0 %v1855
    %2726 = vmatprep.subr.bf16.mxu0 %v1864
    %2727 = vmatpush1.bf16.msra.mxu0 %v1863
    %2728 = vmatprep.subr.bf16.mxu0 %v1872
    %2729 = vmatpush1.bf16.msra.mxu0 %v1871
    %2730 = vmatprep.subr.bf16.mxu0 %v1880
    %2731 = vmatpush1.bf16.msra.mxu0 %v1879
    %2732 = vmatprep.subr.bf16.mxu0 %v1888
    %2733 = vmatpush1.bf16.msra.mxu0 %v1887
    %2734 = vmatprep.subr.bf16.mxu0 %v1896
    %2735 = vmatpush1.bf16.msra.mxu0 %v1895
    %2736 = vmatprep.subr.bf16.mxu0 %v1904
    %2737 = vmatpush1.bf16.msra.mxu0 %v1903
    %2738 = vmatprep.mubr.bf16.mxu0 %v112
    %2739 = vmatmul.mubr.bf16.gmra.mrb[0].mxu0 %v111
    %v2740 = vpop.f32.mrb[0].mxu0
    %v2741 = vadd.f32 %v2700, %v2740
    %v2742 = vpop.f32.mrb[0].mxu0
    %v2743 = vadd.f32 %v2702, %v2742
    %v2744 = vpop.f32.mrb[0].mxu0
    %v2745 = vpop.f32.mrb[0].mxu0
    %2746 = vdwg.mxu0
    %2747 = vmatprep.subr.bf16.mxu0 %v1912
    %2748 = vmatpush1.bf16.msra.mxu0 %v1911
    %2749 = vmatprep.subr.bf16.mxu0 %v1920
    %2750 = vmatpush1.bf16.msra.mxu0 %v1919
    %2751 = vmatprep.subr.bf16.mxu0 %v1928
    %2752 = vmatpush1.bf16.msra.mxu0 %v1927
    %2753 = vmatprep.subr.bf16.mxu0 %v1936
    %2754 = vmatpush1.bf16.msra.mxu0 %v1935
    %2755 = vmatprep.subr.bf16.mxu0 %v1944
    %2756 = vmatpush1.bf16.msra.mxu0 %v1943
    %2757 = vmatprep.subr.bf16.mxu0 %v1952
    %2758 = vmatpush1.bf16.msra.mxu0 %v1951
    %2759 = vmatprep.subr.bf16.mxu0 %v1960
    %2760 = vmatpush1.bf16.msra.mxu0 %v1959
    %2761 = vmatprep.subr.bf16.mxu0 %v1968
    %2762 = vmatpush1.bf16.msra.mxu0 %v1967
    %2763 = vmatprep.subr.bf16.mxu0 %v1976
    %2764 = vmatpush1.bf16.msra.mxu0 %v1975
    %2765 = vmatprep.subr.bf16.mxu0 %v1984
    %2766 = vmatpush1.bf16.msra.mxu0 %v1983
    %2767 = vmatprep.subr.bf16.mxu0 %v1992
    %2768 = vmatpush1.bf16.msra.mxu0 %v1991
    %2769 = vmatprep.subr.bf16.mxu0 %v2000
    %2770 = vmatpush1.bf16.msra.mxu0 %v1999
    %2771 = vmatprep.subr.bf16.mxu0 %v2008
    %2772 = vmatpush1.bf16.msra.mxu0 %v2007
    %2773 = vmatprep.subr.bf16.mxu0 %v2016
    %2774 = vmatpush1.bf16.msra.mxu0 %v2015
    %2775 = vmatprep.subr.bf16.mxu0 %v2024
    %2776 = vmatpush1.bf16.msra.mxu0 %v2023
    %2777 = vmatprep.subr.bf16.mxu0 %v2032
    %2778 = vmatpush1.bf16.msra.mxu0 %v2031
    %2779 = vmatprep.mubr.bf16.mxu0 %v114
    %2780 = vmatmul.mubr.bf16.gmra.mrb[0].mxu0 %v113
    %v2781 = vpop.f32.mrb[0].mxu0
    %v2782 = vadd.f32 %v2741, %v2781
    %v2783 = vpop.f32.mrb[0].mxu0
    %v2784 = vadd.f32 %v2743, %v2783
    %v2785 = vpop.f32.mrb[0].mxu0
    %v2786 = vpop.f32.mrb[0].mxu0
    %2787 = vdwg.mxu0
    %2788 = vmatprep.subr.bf16.mxu0 %v1658
    %2789 = vmatpush1.bf16.msra.mxu0 %v1657
    %2790 = vmatprep.subr.bf16.mxu0 %v1666
    %2791 = vmatpush1.bf16.msra.mxu0 %v1665
    %2792 = vmatprep.subr.bf16.mxu0 %v1674
    %2793 = vmatpush1.bf16.msra.mxu0 %v1673
    %2794 = vmatprep.subr.bf16.mxu0 %v1682
    %2795 = vmatpush1.bf16.msra.mxu0 %v1681
    %2796 = vmatprep.subr.bf16.mxu0 %v1690
    %2797 = vmatpush1.bf16.msra.mxu0 %v1689
    %2798 = vmatprep.subr.bf16.mxu0 %v1698
    %2799 = vmatpush1.bf16.msra.mxu0 %v1697
    %2800 = vmatprep.subr.bf16.mxu0 %v1706
    %2801 = vmatpush1.bf16.msra.mxu0 %v1705
    %2802 = vmatprep.subr.bf16.mxu0 %v1714
    %2803 = vmatpush1.bf16.msra.mxu0 %v1713
    %2804 = vmatprep.subr.bf16.mxu0 %v1722
    %2805 = vmatpush1.bf16.msra.mxu0 %v1721
    %2806 = vmatprep.subr.bf16.mxu0 %v1730
    %2807 = vmatpush1.bf16.msra.mxu0 %v1729
    %2808 = vmatprep.subr.bf16.mxu0 %v1738
    %2809 = vmatpush1.bf16.msra.mxu0 %v1737
    %2810 = vmatprep.subr.bf16.mxu0 %v1746
    %2811 = vmatpush1.bf16.msra.mxu0 %v1745
    %2812 = vmatprep.subr.bf16.mxu0 %v1754
    %2813 = vmatpush1.bf16.msra.mxu0 %v1753
    %2814 = vmatprep.subr.bf16.mxu0 %v1762
    %2815 = vmatpush1.bf16.msra.mxu0 %v1761
    %2816 = vmatprep.subr.bf16.mxu0 %v1770
    %2817 = vmatpush1.bf16.msra.mxu0 %v1769
    %2818 = vmatprep.subr.bf16.mxu0 %v1778
    %2819 = vmatpush1.bf16.msra.mxu0 %v1777
    %2820 = vmatprep.mubr.bf16.mxu0 %v110
    %2821 = vmatmul.mubr.bf16.gmra.mrb[0].mxu0 %v109
    %v2822 = vpop.f32.mrb[0].mxu0
    %v2823 = vadd.f32 0.0, %v2822
    %v2824 = vpop.f32.mrb[0].mxu0
    %v2825 = vadd.f32 0.0, %v2824
    %v2826 = vpop.f32.mrb[0].mxu0
    %v2827 = vpop.f32.mrb[0].mxu0
    %2828 = vdwg.mxu0
    %2829 = vmatprep.subr.bf16.mxu0 %v1786
    %2830 = vmatpush1.bf16.msra.mxu0 %v1785
    %2831 = vmatprep.subr.bf16.mxu0 %v1794
    %2832 = vmatpush1.bf16.msra.mxu0 %v1793
    %2833 = vmatprep.subr.bf16.mxu0 %v1802
    %2834 = vmatpush1.bf16.msra.mxu0 %v1801
    %2835 = vmatprep.subr.bf16.mxu0 %v1810
    %2836 = vmatpush1.bf16.msra.mxu0 %v1809
    %2837 = vmatprep.subr.bf16.mxu0 %v1818
    %2838 = vmatpush1.bf16.msra.mxu0 %v1817
    %2839 = vmatprep.subr.bf16.mxu0 %v1826
    %2840 = vmatpush1.bf16.msra.mxu0 %v1825
    %2841 = vmatprep.subr.bf16.mxu0 %v1834
    %2842 = vmatpush1.bf16.msra.mxu0 %v1833
    %2843 = vmatprep.subr.bf16.mxu0 %v1842
    %2844 = vmatpush1.bf16.msra.mxu0 %v1841
    %2845 = vmatprep.subr.bf16.mxu0 %v1850
    %2846 = vmatpush1.bf16.msra.mxu0 %v1849
    %2847 = vmatprep.subr.bf16.mxu0 %v1858
    %2848 = vmatpush1.bf16.msra.mxu0 %v1857
    %2849 = vmatprep.subr.bf16.mxu0 %v1866
    %2850 = vmatpush1.bf16.msra.mxu0 %v1865
    %2851 = vmatprep.subr.bf16.mxu0 %v1874
    %2852 = vmatpush1.bf16.msra.mxu0 %v1873
    %2853 = vmatprep.subr.bf16.mxu0 %v1882
    %2854 = vmatpush1.bf16.msra.mxu0 %v1881
    %2855 = vmatprep.subr.bf16.mxu0 %v1890
    %2856 = vmatpush1.bf16.msra.mxu0 %v1889
    %2857 = vmatprep.subr.bf16.mxu0 %v1898
    %2858 = vmatpush1.bf16.msra.mxu0 %v1897
    %2859 = vmatprep.subr.bf16.mxu0 %v1906
    %2860 = vmatpush1.bf16.msra.mxu0 %v1905
    %2861 = vmatprep.mubr.bf16.mxu0 %v112
    %2862 = vmatmul.mubr.bf16.gmra.mrb[0].mxu0 %v111
    %v2863 = vpop.f32.mrb[0].mxu0
    %v2864 = vadd.f32 %v2823, %v2863
    %v2865 = vpop.f32.mrb[0].mxu0
    %v2866 = vadd.f32 %v2825, %v2865
    %v2867 = vpop.f32.mrb[0].mxu0
    %v2868 = vpop.f32.mrb[0].mxu0
    %2869 = vdwg.mxu0
    %2870 = vmatprep.subr.bf16.mxu0 %v1914
    %2871 = vmatpush1.bf16.msra.mxu0 %v1913
    %2872 = vmatprep.subr.bf16.mxu0 %v1922
    %2873 = vmatpush1.bf16.msra.mxu0 %v1921
    %2874 = vmatprep.subr.bf16.mxu0 %v1930
    %2875 = vmatpush1.bf16.msra.mxu0 %v1929
    %2876 = vmatprep.subr.bf16.mxu0 %v1938
    %2877 = vmatpush1.bf16.msra.mxu0 %v1937
    %2878 = vmatprep.subr.bf16.mxu0 %v1946
    %2879 = vmatpush1.bf16.msra.mxu0 %v1945
    %2880 = vmatprep.subr.bf16.mxu0 %v1954
    %2881 = vmatpush1.bf16.msra.mxu0 %v1953
    %2882 = vmatprep.subr.bf16.mxu0 %v1962
    %2883 = vmatpush1.bf16.msra.mxu0 %v1961
    %2884 = vmatprep.subr.bf16.mxu0 %v1970
    %2885 = vmatpush1.bf16.msra.mxu0 %v1969
    %2886 = vmatprep.subr.bf16.mxu0 %v1978
    %2887 = vmatpush1.bf16.msra.mxu0 %v1977
    %2888 = vmatprep.subr.bf16.mxu0 %v1986
    %2889 = vmatpush1.bf16.msra.mxu0 %v1985
    %2890 = vmatprep.subr.bf16.mxu0 %v1994
    %2891 = vmatpush1.bf16.msra.mxu0 %v1993
    %2892 = vmatprep.subr.bf16.mxu0 %v2002
    %2893 = vmatpush1.bf16.msra.mxu0 %v2001
    %2894 = vmatprep.subr.bf16.mxu0 %v2010
    %2895 = vmatpush1.bf16.msra.mxu0 %v2009
    %2896 = vmatprep.subr.bf16.mxu0 %v2018
    %2897 = vmatpush1.bf16.msra.mxu0 %v2017
    %2898 = vmatprep.subr.bf16.mxu0 %v2026
    %2899 = vmatpush1.bf16.msra.mxu0 %v2025
    %2900 = vmatprep.subr.bf16.mxu0 %v2034
    %2901 = vmatpush1.bf16.msra.mxu0 %v2033
    %2902 = vmatprep.mubr.bf16.mxu0 %v114
    %2903 = vmatmul.mubr.bf16.gmra.mrb[0].mxu0 %v113
    %v2904 = vpop.f32.mrb[0].mxu0
    %v2905 = vadd.f32 %v2864, %v2904
    %v2906 = vpop.f32.mrb[0].mxu0
    %v2907 = vadd.f32 %v2866, %v2906
    %v2908 = vpop.f32.mrb[0].mxu0
    %v2909 = vpop.f32.mrb[0].mxu0
    %2910 = vdwg.mxu0
    %v2911 = vmax.f32 %v2536, %v2659
    %v2912 = vmax.f32 %v2538, %v2661
    %v2913 = vmax.f32 %v2782, %v2905
    %v2914 = vmax.f32 %v2784, %v2907
    %v2915 = vmax.f32 %v2911, %v2913
    %v2916 = vmax.f32 %v2912, %v2914
    %v2917 = vld [vmem:[#allocation4] sm:$0x3]
    %v2919 = vlaneseq
    %v2920 = vshrl.u32 %v2919, 7
    %v2921 = vsub.s32 0, %v2920
    %v2922 = vrot.slane %v2917, %v2921
    %v2923 = vlaneseq
    %v2924 = vshrl.u32 %v2923, 7
    %v2925 = vsub.s32 1, %v2924
    %v2926 = vrot.slane %v2917, %v2925
    %v2929 = vadd.f32 %v2915, %v2922
    %v2930 = vadd.f32 %v2916, %v2926
    %vm2931 = vcmp.gt.f32.partialorder %v2929, 0.0
    %vm2932 = vcmp.gt.f32.partialorder %v2930, 0.0
    %v2933 = vmul.f32 %v2929, 1.442695
    %v2934 = vpow.pop %v2933
    %v2935 = vmul.f32 %v2930, 1.442695
    %v2936 = vpow.pop %v2935
    %v2937 = vsub.f32 %v2934, 1.0
    %v2938 = vsub.f32 %v2936, 1.0
    %v2939 = vmul.f32 %v2937, 1.6732632
    %v2940 = vmul.f32 %v2938, 1.6732632
    %v2941 = vsel %vm2931, %v2929, %v2939
    %v2942 = vsel %vm2932, %v2930, %v2940
    %v2943 = vmul.f32 %v2941, 1.050701
    %v2944 = vmul.f32 %v2942, 1.050701
    %v2945 = vpack.c.bf16 %v2943, %v2943
    %v2946 = vpack.c.bf16 %v2944, %v2944
    %v2947 = vld [vmem:[#allocation6] sm:$0xf]
    %v2948 = vld [vmem:[#allocation6 + $0x4] sm:$0xf]
    %v2949 = vld [vmem:[#allocation6 + $0x8] sm:$0xf]
    %v2950 = vld [vmem:[#allocation6 + $0xc] sm:$0xf]
    %v2951 = vld [vmem:[#allocation6 + $0x10] sm:$0xf]
    %v2952 = vld [vmem:[#allocation6 + $0x14] sm:$0xf]
    %v2953 = vld [vmem:[#allocation6 + $0x18] sm:$0xf]
    %v2954 = vld [vmem:[#allocation6 + $0x1c] sm:$0xf]
    %v2955 = vld [vmem:[#allocation6 + $0x20] sm:$0xf]
    %v2956 = vld [vmem:[#allocation6 + $0x24] sm:$0xf]
    %v2957 = vld [vmem:[#allocation6 + $0x28] sm:$0xf]
    %v2958 = vld [vmem:[#allocation6 + $0x2c] sm:$0xf]
    %v2959 = vld [vmem:[#allocation6 + $0x30] sm:$0xf]
    %v2960 = vld [vmem:[#allocation6 + $0x34] sm:$0xf]
    %v2961 = vld [vmem:[#allocation6 + $0x38] sm:$0xf]
    %v2962 = vld [vmem:[#allocation6 + $0x3c] sm:$0xf]
    %v2963 = vld [vmem:[#allocation6 + $0x40] sm:$0xf]
    %v2964 = vld [vmem:[#allocation6 + $0x44] sm:$0xf]
    %v2965 = vld [vmem:[#allocation6 + $0x48] sm:$0xf]
    %v2966 = vld [vmem:[#allocation6 + $0x4c] sm:$0xf]
    %v2967 = vld [vmem:[#allocation6 + $0x50] sm:$0xf]
    %v2968 = vld [vmem:[#allocation6 + $0x54] sm:$0xf]
    %v2969 = vld [vmem:[#allocation6 + $0x58] sm:$0xf]
    %v2970 = vld [vmem:[#allocation6 + $0x5c] sm:$0xf]
    %v2971 = vld [vmem:[#allocation6 + $0x60] sm:$0xf]
    %v2972 = vld [vmem:[#allocation6 + $0x64] sm:$0xf]
    %v2973 = vld [vmem:[#allocation6 + $0x68] sm:$0xf]
    %v2974 = vld [vmem:[#allocation6 + $0x6c] sm:$0xf]
    %v2975 = vld [vmem:[#allocation6 + $0x70] sm:$0xf]
    %v2976 = vld [vmem:[#allocation6 + $0x74] sm:$0xf]
    %v2977 = vld [vmem:[#allocation6 + $0x78] sm:$0xf]
    %v2978 = vld [vmem:[#allocation6 + $0x7c] sm:$0xf]
    %v2979 = vld [vmem:[#allocation7] sm:$0x1]
    %v2981 = vlaneseq
    %v2982 = vshrl.u32 %v2981, 7
    %v2983 = vsub.s32 0, %v2982
    %v2984 = vrot.slane %v2979, %v2983
    %v3018 = vunpack.c.l.b16 %v2947
    %v3019 = vunpack.c.l.b16 %v2948
    %v3020 = vunpack.c.l.b16 %v2949
    %v3021 = vunpack.c.l.b16 %v2950
    %v3022 = vunpack.c.l.b16 %v2951
    %v3023 = vunpack.c.l.b16 %v2952
    %v3024 = vunpack.c.l.b16 %v2953
    %v3025 = vunpack.c.l.b16 %v2954
    %v3026 = vunpack.c.l.b16 %v2955
    %v3027 = vunpack.c.l.b16 %v2956
    %v3028 = vunpack.c.l.b16 %v2957
    %v3029 = vunpack.c.l.b16 %v2958
    %v3030 = vunpack.c.l.b16 %v2959
    %v3031 = vunpack.c.l.b16 %v2960
    %v3032 = vunpack.c.l.b16 %v2961
    %v3033 = vunpack.c.l.b16 %v2962
    %v3034 = vunpack.c.l.b16 %v2963
    %v3035 = vunpack.c.l.b16 %v2964
    %v3036 = vunpack.c.l.b16 %v2965
    %v3037 = vunpack.c.l.b16 %v2966
    %v3038 = vunpack.c.l.b16 %v2967
    %v3039 = vunpack.c.l.b16 %v2968
    %v3040 = vunpack.c.l.b16 %v2969
    %v3041 = vunpack.c.l.b16 %v2970
    %v3042 = vunpack.c.l.b16 %v2971
    %v3043 = vunpack.c.l.b16 %v2972
    %v3044 = vunpack.c.l.b16 %v2973
    %v3045 = vunpack.c.l.b16 %v2974
    %v3046 = vunpack.c.l.b16 %v2975
    %v3047 = vunpack.c.l.b16 %v2976
    %v3048 = vunpack.c.l.b16 %v2977
    %v3049 = vunpack.c.l.b16 %v2978
    %v3050 = vpack.c.b16 %v3019, %v3018
    %v3051 = vpack.c.b16 %v3021, %v3020
    %v3052 = vpack.c.b16 %v3023, %v3022
    %v3053 = vpack.c.b16 %v3025, %v3024
    %v3054 = vpack.c.b16 %v3027, %v3026
    %v3055 = vpack.c.b16 %v3029, %v3028
    %v3056 = vpack.c.b16 %v3031, %v3030
    %v3057 = vpack.c.b16 %v3033, %v3032
    %v3058 = vpack.c.b16 %v3035, %v3034
    %v3059 = vpack.c.b16 %v3037, %v3036
    %v3060 = vpack.c.b16 %v3039, %v3038
    %v3061 = vpack.c.b16 %v3041, %v3040
    %v3062 = vpack.c.b16 %v3043, %v3042
    %v3063 = vpack.c.b16 %v3045, %v3044
    %v3064 = vpack.c.b16 %v3047, %v3046
    %v3065 = vpack.c.b16 %v3049, %v3048
    %3082 = vmatprep.subr.bf16.mxu0 0
    %3083 = vmatpush1.bf16.msra.mxu0 %v3050
    %3084 = vmatprep.subr.bf16.mxu0 0
    %3085 = vmatpush1.bf16.msra.mxu0 %v3051
    %3086 = vmatprep.subr.bf16.mxu0 0
    %3087 = vmatpush1.bf16.msra.mxu0 %v3052
    %3088 = vmatprep.subr.bf16.mxu0 0
    %3089 = vmatpush1.bf16.msra.mxu0 %v3053
    %3090 = vmatprep.subr.bf16.mxu0 0
    %3091 = vmatpush1.bf16.msra.mxu0 %v3054
    %3092 = vmatprep.subr.bf16.mxu0 0
    %3093 = vmatpush1.bf16.msra.mxu0 %v3055
    %3094 = vmatprep.subr.bf16.mxu0 0
    %3095 = vmatpush1.bf16.msra.mxu0 %v3056
    %3096 = vmatprep.subr.bf16.mxu0 0
    %3097 = vmatpush1.bf16.msra.mxu0 %v3057
    %3098 = vmatprep.subr.bf16.mxu0 0
    %3099 = vmatpush1.bf16.msra.mxu0 %v3058
    %3100 = vmatprep.subr.bf16.mxu0 0
    %3101 = vmatpush1.bf16.msra.mxu0 %v3059
    %3102 = vmatprep.subr.bf16.mxu0 0
    %3103 = vmatpush1.bf16.msra.mxu0 %v3060
    %3104 = vmatprep.subr.bf16.mxu0 0
    %3105 = vmatpush1.bf16.msra.mxu0 %v3061
    %3106 = vmatprep.subr.bf16.mxu0 0
    %3107 = vmatpush1.bf16.msra.mxu0 %v3062
    %3108 = vmatprep.subr.bf16.mxu0 0
    %3109 = vmatpush1.bf16.msra.mxu0 %v3063
    %3110 = vmatprep.subr.bf16.mxu0 0
    %3111 = vmatpush1.bf16.msra.mxu0 %v3064
    %3112 = vmatprep.subr.bf16.mxu0 0
    %3113 = vmatpush1.bf16.msra.mxu0 %v3065
    %3114 = vmatprep.mubr.bf16.mxu0 %v2946
    %3115 = vmatmul.mubr.bf16.gmra.mrb[0].mxu0 %v2945
    %v3116 = vpop.f32.mrb[0].mxu0
    %v3117 = vadd.f32 %v2984, %v3116
    %v3118 = vpop.f32.mrb[0].mxu0
    %v3119 = vpop.f32.mrb[0].mxu0
    %v3120 = vpop.f32.mrb[0].mxu0
    %3121 = vdwg.mxu0
    %vm3122 = vcmp.gt.f32.partialorder %v3117, 0.0
    %v3123 = vmul.f32 %v3117, 1.442695
    %v3124 = vpow.pop %v3123
    %v3125 = vsub.f32 %v3124, 1.0
    %v3126 = vmul.f32 %v3125, 1.6732632
    %v3127 = vsel %vm3122, %v3117, %v3126
    %v3128 = vmul.f32 %v3127, 1.050701
    %v3129 = vpack.c.bf16 %v3128, %v3128
    %v3130 = vld [vmem:[#allocation9] sm:$0xf]
    %v3131 = vld [vmem:[#allocation9 + $0x4] sm:$0xf]
    %v3132 = vld [vmem:[#allocation9 + $0x8] sm:$0xf]
    %v3133 = vld [vmem:[#allocation9 + $0xc] sm:$0xf]
    %v3134 = vld [vmem:[#allocation9 + $0x10] sm:$0xf]
    %v3135 = vld [vmem:[#allocation9 + $0x14] sm:$0xf]
    %v3136 = vld [vmem:[#allocation9 + $0x18] sm:$0xf]
    %v3137 = vld [vmem:[#allocation9 + $0x1c] sm:$0xf]
    %v3138 = vld [vmem:[#allocation9 + $0x20] sm:$0xf]
    %v3139 = vld [vmem:[#allocation9 + $0x24] sm:$0xf]
    %v3140 = vld [vmem:[#allocation9 + $0x28] sm:$0xf]
    %v3141 = vld [vmem:[#allocation9 + $0x2c] sm:$0xf]
    %v3142 = vld [vmem:[#allocation9 + $0x30] sm:$0xf]
    %v3143 = vld [vmem:[#allocation9 + $0x34] sm:$0xf]
    %v3144 = vld [vmem:[#allocation9 + $0x38] sm:$0xf]
    %v3145 = vld [vmem:[#allocation9 + $0x3c] sm:$0xf]
    %v3146 = vld [vmem:[#allocation10] sm:$0x1]
    %v3148 = vlaneseq
    %v3149 = vshrl.u32 %v3148, 7
    %v3150 = vsub.s32 0, %v3149
    %v3151 = vrot.slane %v3146, %v3150
    %v3169 = vunpack.c.l.b16 %v3130
    %v3170 = vunpack.c.l.b16 %v3131
    %v3171 = vunpack.c.l.b16 %v3132
    %v3172 = vunpack.c.l.b16 %v3133
    %v3173 = vunpack.c.l.b16 %v3134
    %v3174 = vunpack.c.l.b16 %v3135
    %v3175 = vunpack.c.l.b16 %v3136
    %v3176 = vunpack.c.l.b16 %v3137
    %v3177 = vunpack.c.l.b16 %v3138
    %v3178 = vunpack.c.l.b16 %v3139
    %v3179 = vunpack.c.l.b16 %v3140
    %v3180 = vunpack.c.l.b16 %v3141
    %v3181 = vunpack.c.l.b16 %v3142
    %v3182 = vunpack.c.l.b16 %v3143
    %v3183 = vunpack.c.l.b16 %v3144
    %v3184 = vunpack.c.l.b16 %v3145
    %v3185 = vpack.c.b16 %v3170, %v3169
    %v3186 = vpack.c.b16 %v3172, %v3171
    %v3187 = vpack.c.b16 %v3174, %v3173
    %v3188 = vpack.c.b16 %v3176, %v3175
    %v3189 = vpack.c.b16 %v3178, %v3177
    %v3190 = vpack.c.b16 %v3180, %v3179
    %v3191 = vpack.c.b16 %v3182, %v3181
    %v3192 = vpack.c.b16 %v3184, %v3183
    %3201 = vmatprep.subr.bf16.mxu0 0
    %3202 = vmatpush1.bf16.msra.mxu0 %v3185
    %3203 = vmatprep.subr.bf16.mxu0 0
    %3204 = vmatpush1.bf16.msra.mxu0 %v3186
    %3205 = vmatprep.subr.bf16.mxu0 0
    %3206 = vmatpush1.bf16.msra.mxu0 %v3187
    %3207 = vmatprep.subr.bf16.mxu0 0
    %3208 = vmatpush1.bf16.msra.mxu0 %v3188
    %3209 = vmatprep.subr.bf16.mxu0 0
    %3210 = vmatpush1.bf16.msra.mxu0 %v3189
    %3211 = vmatprep.subr.bf16.mxu0 0
    %3212 = vmatpush1.bf16.msra.mxu0 %v3190
    %3213 = vmatprep.subr.bf16.mxu0 0
    %3214 = vmatpush1.bf16.msra.mxu0 %v3191
    %3215 = vmatprep.subr.bf16.mxu0 0
    %3216 = vmatpush1.bf16.msra.mxu0 %v3192
    %3217 = vmatprep.subr.bf16.mxu0 0
    %3218 = vmatpush1.bf16.msra.mxu0 0
    %3219 = vmatprep.subr.bf16.mxu0 0
    %3220 = vmatpush1.bf16.msra.mxu0 0
    %3221 = vmatprep.subr.bf16.mxu0 0
    %3222 = vmatpush1.bf16.msra.mxu0 0
    %3223 = vmatprep.subr.bf16.mxu0 0
    %3224 = vmatpush1.bf16.msra.mxu0 0
    %3225 = vmatprep.subr.bf16.mxu0 0
    %3226 = vmatpush1.bf16.msra.mxu0 0
    %3227 = vmatprep.subr.bf16.mxu0 0
    %3228 = vmatpush1.bf16.msra.mxu0 0
    %3229 = vmatprep.subr.bf16.mxu0 0
    %3230 = vmatpush1.bf16.msra.mxu0 0
    %3231 = vmatprep.subr.bf16.mxu0 0
    %3232 = vmatpush1.bf16.msra.mxu0 0
    %3233 = vmatprep.mubr.bf16.mxu0 0
    %3234 = vmatmul.mubr.bf16.gmra.mrb[0].mxu0 %v3129
    %v3235 = vpop.f32.mrb[0].mxu0
    %v3236 = vadd.f32 %v3151, %v3235
    %v3237 = vpop.f32.mrb[0].mxu0
    %v3238 = vpop.f32.mrb[0].mxu0
    %v3239 = vpop.f32.mrb[0].mxu0
    %3240 = vdwg.mxu0
    %3241 = vst [vmem:[%s7] sm:$0xff] %v3236
    // Predicated region
    $region54: #{selunet_forward.1} parent=1 // pred_check
      _
    $region55: #{selunet_forward.1} parent=1 // pred_check_branch
      %3243 = sbr.rel (0) target = $region57
    $region56: #{selunet_forward.1} parent=1 // pred_region
      _
    $region57: #{selunet_forward.1} parent=1 // pred_fallthru
      _
    // Predicated region
    $region58: #{selunet_forward.1} parent=1 // pred_check
      _
    $region59: #{selunet_forward.1} parent=1 // pred_check_branch
      %3245 = sbr.rel (0) target = $region61
    $region60: #{selunet_forward.1} parent=1 // pred_region
      _
    $region61: #{selunet_forward.1} parent=1 // pred_fallthru
      _
    %3246 = vsyncpa [#allocation3], 1
    %3247 = vsyncpa [#allocation5], 1
    %3248 = vsyncpa [#allocation8], 1
    %3249 = vsyncpa [#allocation11], 1

</llo_original>
